<compile_context>
chip_gen: v5e
topology: v5e:2x2
jax: 0.10.0
libtpu: 0.0.40
codegen_flags: <defaults>
</compile_context>

<pallas_src>
import jax
import jax.numpy as jnp
from jax.experimental import pallas as pl
from jax.experimental.pallas import tpu as pltpu


def lstm_fc_kernel(xs_ref,                       # (T*Bp, D)   time-major, flattened
                   h0f_ref, c0f_ref,             # (Bp, H)     forward-dir init state
                   h0b_ref, c0b_ref,             # (Bp, H)     backward-dir init state
                   wih_f_ref, whh_f_ref, bf_ref,     # (D,4H), (H,4H), (1,4H)
                   wih_b_ref, whh_b_ref, bb_ref,     # (D,4H), (H,4H), (1,4H)
                   wfc_f_ref, wfc_b_ref, bfc_ref,    # (H,128), (H,128), (1,128)
                   out_ref):                     # (Bp, 128)   lane-padded output
    Bp, H = h0f_ref.shape
    TB = xs_ref.shape[0]
    T = TB // Bp

    xs = xs_ref[...]                                              # (T*Bp, D)

    def gates_to_hc(gates, c):
        # PyTorch gate order: i, f, g, o. H == 128 -> each slice is a full
        # lane tile (no cross-lane shuffles).
        i = jax.nn.sigmoid(gates[:, 0 * H:1 * H])
        f = jax.nn.sigmoid(gates[:, 1 * H:2 * H])
        g = jnp.tanh(gates[:, 2 * H:3 * H])
        o = jax.nn.sigmoid(gates[:, 3 * H:4 * H])
        c_new = f * c + i * g
        h_new = o * jnp.tanh(c_new)
        return h_new, c_new

    # ---- forward direction ----
    # Hoisted input projection: one large matmul for all T steps, bias folded in.
    gx = (jnp.dot(xs, wih_f_ref[...], preferred_element_type=jnp.float32)
          + bf_ref[...])                                          # (T*Bp, 4H)
    whh_f = whh_f_ref[...]

    h = h0f_ref[...]
    c = c0f_ref[...]
    # Statically unrolled recurrence: exactly one dependent matmul per step.
    for t in range(T):
        gates = (gx[t * Bp:(t + 1) * Bp, :]
                 + jnp.dot(h, whh_f, preferred_element_type=jnp.float32))
        h, c = gates_to_hc(gates, c)
    h_f = h                                                       # (Bp, H)

    # ---- backward direction ----
    # output[:, T-1, H:2H] of a bidirectional LSTM is the backward LSTM's
    # hidden after its FIRST step (it scans reversed), so a single cell step
    # on x[:, T-1, :] from the initial state is sufficient.
    x_last = xs[(T - 1) * Bp:T * Bp, :]                           # (Bp, D)
    gates_b = (jnp.dot(x_last, wih_b_ref[...], preferred_element_type=jnp.float32)
               + jnp.dot(h0b_ref[...], whh_b_ref[...], preferred_element_type=jnp.float32)
               + bb_ref[...])
    h_b, _ = gates_to_hc(gates_b, c0b_ref[...])                   # (Bp, H)

    # ---- fully connected on [h_f ++ h_b], lane-padded to 128 output columns ----
    out = (jnp.dot(h_f, wfc_f_ref[...], preferred_element_type=jnp.float32)
           + jnp.dot(h_b, wfc_b_ref[...], preferred_element_type=jnp.float32)
           + bfc_ref[...])
    out_ref[...] = out.astype(out_ref.dtype)


def lstm_model_forward(x, hidden, params):
    """x: (B, T, D) float32, hidden: (h0, c0) each (2, B, H). Returns (B, 2)."""
    h0, c0 = hidden
    B, T, D = x.shape
    H = h0.shape[-1]

    # Pad batch to the f32 sublane minimum (8) so every vreg / MXU row is used.
    Bp = max(8, ((B + 7) // 8) * 8)
    pad_b = Bp - B

    xs = jnp.transpose(x, (1, 0, 2)).astype(jnp.float32)          # (T, B, D)
    xs = jnp.pad(xs, ((0, 0), (0, pad_b), (0, 0)))                # (T, Bp, D)
    xs_flat = xs.reshape(T * Bp, D)                               # (T*Bp, D)

    def padb(a):
        return jnp.pad(a.astype(jnp.float32), ((0, pad_b), (0, 0)))

    h0f, c0f = padb(h0[0]), padb(c0[0])
    h0b, c0b = padb(h0[1]), padb(c0[1])

    # Lane-pad the FC weight/bias so the kernel's output store is lane-dense.
    OUT_LANES = 128
    wfc = params["w_fc_t"]                                        # (2H, 2)
    wfc_pad = jnp.pad(wfc, ((0, 0), (0, OUT_LANES - wfc.shape[1])))
    wfc_f = wfc_pad[:H, :]                                        # (H, 128)
    wfc_b = wfc_pad[H:, :]                                        # (H, 128)
    bfc_pad = jnp.pad(params["b_fc"],
                      ((0, 0), (0, OUT_LANES - params["b_fc"].shape[1])))

    args = (
        xs_flat,
        h0f, c0f, h0b, c0b,
        params["w_ih_f_t"], params["w_hh_f_t"], params["b_f"],
        params["w_ih_b_t"], params["w_hh_b_t"], params["b_b"],
        wfc_f, wfc_b, bfc_pad,
    )

    vmem = pl.BlockSpec(memory_space=pltpu.MemorySpace.VMEM)
    out_pad = pl.pallas_call(
        lstm_fc_kernel,
        out_shape=jax.ShapeDtypeStruct((Bp, OUT_LANES), jnp.float32),
        in_specs=[vmem] * len(args),
        out_specs=vmem,
        compiler_params=pltpu.CompilerParams(vmem_limit_bytes=32 * 1024 * 1024),
    )(*args)

    return out_pad[:B, :2]


def init_params(key, input_size, hidden_size):
    """Deterministic init mirroring PyTorch shapes:
       LSTM weight_ih (4H, D), weight_hh (4H, H), biases (4H,) per direction;
       Linear weight (2, 2H), bias (2,). Stored pre-transposed for the kernel."""
    H, D = hidden_size, input_size
    bound = 1.0 / (H ** 0.5)
    ks = jax.random.split(key, 12)

    def u(k, shape):
        return jax.random.uniform(k, shape, jnp.float32, -bound, bound)

    w_ih_f = u(ks[0], (4 * H, D))
    w_hh_f = u(ks[1], (4 * H, H))
    b_ih_f = u(ks[2], (4 * H,))
    b_hh_f = u(ks[3], (4 * H,))
    w_ih_b = u(ks[4], (4 * H, D))
    w_hh_b = u(ks[5], (4 * H, H))
    b_ih_b = u(ks[6], (4 * H,))
    b_hh_b = u(ks[7], (4 * H,))
    bound_fc = 1.0 / ((2 * H) ** 0.5)
    w_fc = jax.random.uniform(ks[8], (2, 2 * H), jnp.float32, -bound_fc, bound_fc)
    b_fc = jax.random.uniform(ks[9], (2,), jnp.float32, -bound_fc, bound_fc)

    return {
        "w_ih_f_t": w_ih_f.T,                         # (D, 4H)
        "w_hh_f_t": w_hh_f.T,                         # (H, 4H)
        "b_f": (b_ih_f + b_hh_f).reshape(1, 4 * H),   # (1, 4H)
        "w_ih_b_t": w_ih_b.T,
        "w_hh_b_t": w_hh_b.T,
        "b_b": (b_ih_b + b_hh_b).reshape(1, 4 * H),
        "w_fc_t": w_fc.T,                             # (2H, 2)
        "b_fc": b_fc.reshape(1, 2),                   # (1, 2)
    }


if __name__ == "__main__":
    # hidden_size=128 is the module default; batch=2, seq=8, input features=16.
    B, T, D, H = 2, 8, 16, 128
    key = jax.random.PRNGKey(0)
    kx, kp = jax.random.split(key)

    x = jax.random.normal(kx, (B, T, D), jnp.float32)
    params = init_params(kp, D, H)

    # LSTM_Model.init_hidden(batch_size): zeros of shape (num_layers*2, B, H)
    h0 = jnp.zeros((2, B, H), jnp.float32)
    c0 = jnp.zeros((2, B, H), jnp.float32)

    out = lstm_model_forward(x, (h0, c0), params)
    out = jax.block_until_ready(out)
    assert out.shape == (B, 2) and out.dtype == jnp.float32
    print("KERNEL_OK")
</pallas_src>

<mosaic_0001>
module attributes {stable_mosaic.version = 11 : i64} {
  func.func @lstm_fc_kernel(%arg0: memref<64x16xf32, #tpu.memory_space<vmem>>, %arg1: memref<8x128xf32, #tpu.memory_space<vmem>>, %arg2: memref<8x128xf32, #tpu.memory_space<vmem>>, %arg3: memref<8x128xf32, #tpu.memory_space<vmem>>, %arg4: memref<8x128xf32, #tpu.memory_space<vmem>>, %arg5: memref<16x512xf32, #tpu.memory_space<vmem>>, %arg6: memref<128x512xf32, #tpu.memory_space<vmem>>, %arg7: memref<1x512xf32, #tpu.memory_space<vmem>>, %arg8: memref<16x512xf32, #tpu.memory_space<vmem>>, %arg9: memref<128x512xf32, #tpu.memory_space<vmem>>, %arg10: memref<1x512xf32, #tpu.memory_space<vmem>>, %arg11: memref<128x128xf32, #tpu.memory_space<vmem>>, %arg12: memref<128x128xf32, #tpu.memory_space<vmem>>, %arg13: memref<1x128xf32, #tpu.memory_space<vmem>>, %arg14: memref<8x128xf32, #tpu.memory_space<vmem>>) attributes {dimension_semantics = [], scalar_prefetch = 0 : i64, scratch_operands = 0 : i64, tpu.core_type = #tpu.core_type<tc>} {
    %c0 = arith.constant 0 : index
    %c0_0 = arith.constant 0 : index
    %0 = vector.load %arg0[%c0, %c0_0] : memref<64x16xf32, #tpu.memory_space<vmem>>, vector<64x16xf32>
    %c0_1 = arith.constant 0 : index
    %c0_2 = arith.constant 0 : index
    %1 = vector.load %arg5[%c0_1, %c0_2] : memref<16x512xf32, #tpu.memory_space<vmem>>, vector<16x512xf32>
    %cst = arith.constant dense<0.000000e+00> : vector<64x512xf32>
    %2 = tpu.matmul %0, %1, %cst {dimension_numbers = #tpu.dot_dimension_numbers<[1], [0], [0], [1], [0, 0, 1, 1], [], []>} : vector<64x16xf32>, vector<16x512xf32>, vector<64x512xf32> -> vector<64x512xf32>
    %c0_3 = arith.constant 0 : index
    %c0_4 = arith.constant 0 : index
    %3 = vector.load %arg7[%c0_3, %c0_4] : memref<1x512xf32, #tpu.memory_space<vmem>>, vector<1x512xf32>
    %4 = vector.broadcast %3 : vector<1x512xf32> to vector<64x512xf32>
    %5 = arith.addf %2, %4 : vector<64x512xf32>
    %c0_5 = arith.constant 0 : index
    %c0_6 = arith.constant 0 : index
    %6 = vector.load %arg6[%c0_5, %c0_6] : memref<128x512xf32, #tpu.memory_space<vmem>>, vector<128x512xf32>
    %c0_7 = arith.constant 0 : index
    %c0_8 = arith.constant 0 : index
    %7 = vector.load %arg1[%c0_7, %c0_8] : memref<8x128xf32, #tpu.memory_space<vmem>>, vector<8x128xf32>
    %c0_9 = arith.constant 0 : index
    %c0_10 = arith.constant 0 : index
    %8 = vector.load %arg2[%c0_9, %c0_10] : memref<8x128xf32, #tpu.memory_space<vmem>>, vector<8x128xf32>
    %9 = vector.extract_strided_slice %5 {offsets = [0, 0], sizes = [8, 512], strides = [1, 1]} : vector<64x512xf32> to vector<8x512xf32>
    %cst_11 = arith.constant dense<0.000000e+00> : vector<8x512xf32>
    %10 = tpu.matmul %7, %6, %cst_11 {dimension_numbers = #tpu.dot_dimension_numbers<[1], [0], [0], [1], [0, 0, 1, 1], [], []>} : vector<8x128xf32>, vector<128x512xf32>, vector<8x512xf32> -> vector<8x512xf32>
    %11 = arith.addf %9, %10 : vector<8x512xf32>
    %12 = vector.extract_strided_slice %11 {offsets = [0, 0], sizes = [8, 128], strides = [1, 1]} : vector<8x512xf32> to vector<8x128xf32>
    %13 = arith.negf %12 : vector<8x128xf32>
    %14 = math.exp %13 : vector<8x128xf32>
    %cst_12 = arith.constant 1.000000e+00 : f32
    %15 = vector.broadcast %cst_12 : f32 to vector<8x128xf32>
    %16 = arith.addf %15, %14 : vector<8x128xf32>
    %17 = arith.divf %15, %16 : vector<8x128xf32>
    %18 = vector.extract_strided_slice %11 {offsets = [0, 128], sizes = [8, 128], strides = [1, 1]} : vector<8x512xf32> to vector<8x128xf32>
    %19 = arith.negf %18 : vector<8x128xf32>
    %20 = math.exp %19 : vector<8x128xf32>
    %cst_13 = arith.constant 1.000000e+00 : f32
    %21 = vector.broadcast %cst_13 : f32 to vector<8x128xf32>
    %22 = arith.addf %21, %20 : vector<8x128xf32>
    %23 = arith.divf %21, %22 : vector<8x128xf32>
    %24 = vector.extract_strided_slice %11 {offsets = [0, 256], sizes = [8, 128], strides = [1, 1]} : vector<8x512xf32> to vector<8x128xf32>
    %25 = math.tanh %24 : vector<8x128xf32>
    %26 = vector.extract_strided_slice %11 {offsets = [0, 384], sizes = [8, 128], strides = [1, 1]} : vector<8x512xf32> to vector<8x128xf32>
    %27 = arith.negf %26 : vector<8x128xf32>
    %28 = math.exp %27 : vector<8x128xf32>
    %cst_14 = arith.constant 1.000000e+00 : f32
    %29 = vector.broadcast %cst_14 : f32 to vector<8x128xf32>
    %30 = arith.addf %29, %28 : vector<8x128xf32>
    %31 = arith.divf %29, %30 : vector<8x128xf32>
    %32 = arith.mulf %23, %8 : vector<8x128xf32>
    %33 = arith.mulf %17, %25 : vector<8x128xf32>
    %34 = arith.addf %32, %33 : vector<8x128xf32>
    %35 = math.tanh %34 : vector<8x128xf32>
    %36 = arith.mulf %31, %35 : vector<8x128xf32>
    %37 = vector.extract_strided_slice %5 {offsets = [8, 0], sizes = [8, 512], strides = [1, 1]} : vector<64x512xf32> to vector<8x512xf32>
    %cst_15 = arith.constant dense<0.000000e+00> : vector<8x512xf32>
    %38 = tpu.matmul %36, %6, %cst_15 {dimension_numbers = #tpu.dot_dimension_numbers<[1], [0], [0], [1], [0, 0, 1, 1], [], []>} : vector<8x128xf32>, vector<128x512xf32>, vector<8x512xf32> -> vector<8x512xf32>
    %39 = arith.addf %37, %38 : vector<8x512xf32>
    %40 = vector.extract_strided_slice %39 {offsets = [0, 0], sizes = [8, 128], strides = [1, 1]} : vector<8x512xf32> to vector<8x128xf32>
    %41 = arith.negf %40 : vector<8x128xf32>
    %42 = math.exp %41 : vector<8x128xf32>
    %cst_16 = arith.constant 1.000000e+00 : f32
    %43 = vector.broadcast %cst_16 : f32 to vector<8x128xf32>
    %44 = arith.addf %43, %42 : vector<8x128xf32>
    %45 = arith.divf %43, %44 : vector<8x128xf32>
    %46 = vector.extract_strided_slice %39 {offsets = [0, 128], sizes = [8, 128], strides = [1, 1]} : vector<8x512xf32> to vector<8x128xf32>
    %47 = arith.negf %46 : vector<8x128xf32>
    %48 = math.exp %47 : vector<8x128xf32>
    %cst_17 = arith.constant 1.000000e+00 : f32
    %49 = vector.broadcast %cst_17 : f32 to vector<8x128xf32>
    %50 = arith.addf %49, %48 : vector<8x128xf32>
    %51 = arith.divf %49, %50 : vector<8x128xf32>
    %52 = vector.extract_strided_slice %39 {offsets = [0, 256], sizes = [8, 128], strides = [1, 1]} : vector<8x512xf32> to vector<8x128xf32>
    %53 = math.tanh %52 : vector<8x128xf32>
    %54 = vector.extract_strided_slice %39 {offsets = [0, 384], sizes = [8, 128], strides = [1, 1]} : vector<8x512xf32> to vector<8x128xf32>
    %55 = arith.negf %54 : vector<8x128xf32>
    %56 = math.exp %55 : vector<8x128xf32>
    %cst_18 = arith.constant 1.000000e+00 : f32
    %57 = vector.broadcast %cst_18 : f32 to vector<8x128xf32>
    %58 = arith.addf %57, %56 : vector<8x128xf32>
    %59 = arith.divf %57, %58 : vector<8x128xf32>
    %60 = arith.mulf %51, %34 : vector<8x128xf32>
    %61 = arith.mulf %45, %53 : vector<8x128xf32>
    %62 = arith.addf %60, %61 : vector<8x128xf32>
    %63 = math.tanh %62 : vector<8x128xf32>
    %64 = arith.mulf %59, %63 : vector<8x128xf32>
    %65 = vector.extract_strided_slice %5 {offsets = [16, 0], sizes = [8, 512], strides = [1, 1]} : vector<64x512xf32> to vector<8x512xf32>
    %cst_19 = arith.constant dense<0.000000e+00> : vector<8x512xf32>
    %66 = tpu.matmul %64, %6, %cst_19 {dimension_numbers = #tpu.dot_dimension_numbers<[1], [0], [0], [1], [0, 0, 1, 1], [], []>} : vector<8x128xf32>, vector<128x512xf32>, vector<8x512xf32> -> vector<8x512xf32>
    %67 = arith.addf %65, %66 : vector<8x512xf32>
    %68 = vector.extract_strided_slice %67 {offsets = [0, 0], sizes = [8, 128], strides = [1, 1]} : vector<8x512xf32> to vector<8x128xf32>
    %69 = arith.negf %68 : vector<8x128xf32>
    %70 = math.exp %69 : vector<8x128xf32>
    %cst_20 = arith.constant 1.000000e+00 : f32
    %71 = vector.broadcast %cst_20 : f32 to vector<8x128xf32>
    %72 = arith.addf %71, %70 : vector<8x128xf32>
    %73 = arith.divf %71, %72 : vector<8x128xf32>
    %74 = vector.extract_strided_slice %67 {offsets = [0, 128], sizes = [8, 128], strides = [1, 1]} : vector<8x512xf32> to vector<8x128xf32>
    %75 = arith.negf %74 : vector<8x128xf32>
    %76 = math.exp %75 : vector<8x128xf32>
    %cst_21 = arith.constant 1.000000e+00 : f32
    %77 = vector.broadcast %cst_21 : f32 to vector<8x128xf32>
    %78 = arith.addf %77, %76 : vector<8x128xf32>
    %79 = arith.divf %77, %78 : vector<8x128xf32>
    %80 = vector.extract_strided_slice %67 {offsets = [0, 256], sizes = [8, 128], strides = [1, 1]} : vector<8x512xf32> to vector<8x128xf32>
    %81 = math.tanh %80 : vector<8x128xf32>
    %82 = vector.extract_strided_slice %67 {offsets = [0, 384], sizes = [8, 128], strides = [1, 1]} : vector<8x512xf32> to vector<8x128xf32>
    %83 = arith.negf %82 : vector<8x128xf32>
    %84 = math.exp %83 : vector<8x128xf32>
    %cst_22 = arith.constant 1.000000e+00 : f32
    %85 = vector.broadcast %cst_22 : f32 to vector<8x128xf32>
    %86 = arith.addf %85, %84 : vector<8x128xf32>
    %87 = arith.divf %85, %86 : vector<8x128xf32>
    %88 = arith.mulf %79, %62 : vector<8x128xf32>
    %89 = arith.mulf %73, %81 : vector<8x128xf32>
    %90 = arith.addf %88, %89 : vector<8x128xf32>
    %91 = math.tanh %90 : vector<8x128xf32>
    %92 = arith.mulf %87, %91 : vector<8x128xf32>
    %93 = vector.extract_strided_slice %5 {offsets = [24, 0], sizes = [8, 512], strides = [1, 1]} : vector<64x512xf32> to vector<8x512xf32>
    %cst_23 = arith.constant dense<0.000000e+00> : vector<8x512xf32>
    %94 = tpu.matmul %92, %6, %cst_23 {dimension_numbers = #tpu.dot_dimension_numbers<[1], [0], [0], [1], [0, 0, 1, 1], [], []>} : vector<8x128xf32>, vector<128x512xf32>, vector<8x512xf32> -> vector<8x512xf32>
    %95 = arith.addf %93, %94 : vector<8x512xf32>
    %96 = vector.extract_strided_slice %95 {offsets = [0, 0], sizes = [8, 128], strides = [1, 1]} : vector<8x512xf32> to vector<8x128xf32>
    %97 = arith.negf %96 : vector<8x128xf32>
    %98 = math.exp %97 : vector<8x128xf32>
    %cst_24 = arith.constant 1.000000e+00 : f32
    %99 = vector.broadcast %cst_24 : f32 to vector<8x128xf32>
    %100 = arith.addf %99, %98 : vector<8x128xf32>
    %101 = arith.divf %99, %100 : vector<8x128xf32>
    %102 = vector.extract_strided_slice %95 {offsets = [0, 128], sizes = [8, 128], strides = [1, 1]} : vector<8x512xf32> to vector<8x128xf32>
    %103 = arith.negf %102 : vector<8x128xf32>
    %104 = math.exp %103 : vector<8x128xf32>
    %cst_25 = arith.constant 1.000000e+00 : f32
    %105 = vector.broadcast %cst_25 : f32 to vector<8x128xf32>
    %106 = arith.addf %105, %104 : vector<8x128xf32>
    %107 = arith.divf %105, %106 : vector<8x128xf32>
    %108 = vector.extract_strided_slice %95 {offsets = [0, 256], sizes = [8, 128], strides = [1, 1]} : vector<8x512xf32> to vector<8x128xf32>
    %109 = math.tanh %108 : vector<8x128xf32>
    %110 = vector.extract_strided_slice %95 {offsets = [0, 384], sizes = [8, 128], strides = [1, 1]} : vector<8x512xf32> to vector<8x128xf32>
    %111 = arith.negf %110 : vector<8x128xf32>
    %112 = math.exp %111 : vector<8x128xf32>
    %cst_26 = arith.constant 1.000000e+00 : f32
    %113 = vector.broadcast %cst_26 : f32 to vector<8x128xf32>
    %114 = arith.addf %113, %112 : vector<8x128xf32>
    %115 = arith.divf %113, %114 : vector<8x128xf32>
    %116 = arith.mulf %107, %90 : vector<8x128xf32>
    %117 = arith.mulf %101, %109 : vector<8x128xf32>
    %118 = arith.addf %116, %117 : vector<8x128xf32>
    %119 = math.tanh %118 : vector<8x128xf32>
    %120 = arith.mulf %115, %119 : vector<8x128xf32>
    %121 = vector.extract_strided_slice %5 {offsets = [32, 0], sizes = [8, 512], strides = [1, 1]} : vector<64x512xf32> to vector<8x512xf32>
    %cst_27 = arith.constant dense<0.000000e+00> : vector<8x512xf32>
    %122 = tpu.matmul %120, %6, %cst_27 {dimension_numbers = #tpu.dot_dimension_numbers<[1], [0], [0], [1], [0, 0, 1, 1], [], []>} : vector<8x128xf32>, vector<128x512xf32>, vector<8x512xf32> -> vector<8x512xf32>
    %123 = arith.addf %121, %122 : vector<8x512xf32>
    %124 = vector.extract_strided_slice %123 {offsets = [0, 0], sizes = [8, 128], strides = [1, 1]} : vector<8x512xf32> to vector<8x128xf32>
    %125 = arith.negf %124 : vector<8x128xf32>
    %126 = math.exp %125 : vector<8x128xf32>
    %cst_28 = arith.constant 1.000000e+00 : f32
    %127 = vector.broadcast %cst_28 : f32 to vector<8x128xf32>
    %128 = arith.addf %127, %126 : vector<8x128xf32>
    %129 = arith.divf %127, %128 : vector<8x128xf32>
    %130 = vector.extract_strided_slice %123 {offsets = [0, 128], sizes = [8, 128], strides = [1, 1]} : vector<8x512xf32> to vector<8x128xf32>
    %131 = arith.negf %130 : vector<8x128xf32>
    %132 = math.exp %131 : vector<8x128xf32>
    %cst_29 = arith.constant 1.000000e+00 : f32
    %133 = vector.broadcast %cst_29 : f32 to vector<8x128xf32>
    %134 = arith.addf %133, %132 : vector<8x128xf32>
    %135 = arith.divf %133, %134 : vector<8x128xf32>
    %136 = vector.extract_strided_slice %123 {offsets = [0, 256], sizes = [8, 128], strides = [1, 1]} : vector<8x512xf32> to vector<8x128xf32>
    %137 = math.tanh %136 : vector<8x128xf32>
    %138 = vector.extract_strided_slice %123 {offsets = [0, 384], sizes = [8, 128], strides = [1, 1]} : vector<8x512xf32> to vector<8x128xf32>
    %139 = arith.negf %138 : vector<8x128xf32>
    %140 = math.exp %139 : vector<8x128xf32>
    %cst_30 = arith.constant 1.000000e+00 : f32
    %141 = vector.broadcast %cst_30 : f32 to vector<8x128xf32>
    %142 = arith.addf %141, %140 : vector<8x128xf32>
    %143 = arith.divf %141, %142 : vector<8x128xf32>
    %144 = arith.mulf %135, %118 : vector<8x128xf32>
    %145 = arith.mulf %129, %137 : vector<8x128xf32>
    %146 = arith.addf %144, %145 : vector<8x128xf32>
    %147 = math.tanh %146 : vector<8x128xf32>
    %148 = arith.mulf %143, %147 : vector<8x128xf32>
    %149 = vector.extract_strided_slice %5 {offsets = [40, 0], sizes = [8, 512], strides = [1, 1]} : vector<64x512xf32> to vector<8x512xf32>
    %cst_31 = arith.constant dense<0.000000e+00> : vector<8x512xf32>
    %150 = tpu.matmul %148, %6, %cst_31 {dimension_numbers = #tpu.dot_dimension_numbers<[1], [0], [0], [1], [0, 0, 1, 1], [], []>} : vector<8x128xf32>, vector<128x512xf32>, vector<8x512xf32> -> vector<8x512xf32>
    %151 = arith.addf %149, %150 : vector<8x512xf32>
    %152 = vector.extract_strided_slice %151 {offsets = [0, 0], sizes = [8, 128], strides = [1, 1]} : vector<8x512xf32> to vector<8x128xf32>
    %153 = arith.negf %152 : vector<8x128xf32>
    %154 = math.exp %153 : vector<8x128xf32>
    %cst_32 = arith.constant 1.000000e+00 : f32
    %155 = vector.broadcast %cst_32 : f32 to vector<8x128xf32>
    %156 = arith.addf %155, %154 : vector<8x128xf32>
    %157 = arith.divf %155, %156 : vector<8x128xf32>
    %158 = vector.extract_strided_slice %151 {offsets = [0, 128], sizes = [8, 128], strides = [1, 1]} : vector<8x512xf32> to vector<8x128xf32>
    %159 = arith.negf %158 : vector<8x128xf32>
    %160 = math.exp %159 : vector<8x128xf32>
    %cst_33 = arith.constant 1.000000e+00 : f32
    %161 = vector.broadcast %cst_33 : f32 to vector<8x128xf32>
    %162 = arith.addf %161, %160 : vector<8x128xf32>
    %163 = arith.divf %161, %162 : vector<8x128xf32>
    %164 = vector.extract_strided_slice %151 {offsets = [0, 256], sizes = [8, 128], strides = [1, 1]} : vector<8x512xf32> to vector<8x128xf32>
    %165 = math.tanh %164 : vector<8x128xf32>
    %166 = vector.extract_strided_slice %151 {offsets = [0, 384], sizes = [8, 128], strides = [1, 1]} : vector<8x512xf32> to vector<8x128xf32>
    %167 = arith.negf %166 : vector<8x128xf32>
    %168 = math.exp %167 : vector<8x128xf32>
    %cst_34 = arith.constant 1.000000e+00 : f32
    %169 = vector.broadcast %cst_34 : f32 to vector<8x128xf32>
    %170 = arith.addf %169, %168 : vector<8x128xf32>
    %171 = arith.divf %169, %170 : vector<8x128xf32>
    %172 = arith.mulf %163, %146 : vector<8x128xf32>
    %173 = arith.mulf %157, %165 : vector<8x128xf32>
    %174 = arith.addf %172, %173 : vector<8x128xf32>
    %175 = math.tanh %174 : vector<8x128xf32>
    %176 = arith.mulf %171, %175 : vector<8x128xf32>
    %177 = vector.extract_strided_slice %5 {offsets = [48, 0], sizes = [8, 512], strides = [1, 1]} : vector<64x512xf32> to vector<8x512xf32>
    %cst_35 = arith.constant dense<0.000000e+00> : vector<8x512xf32>
    %178 = tpu.matmul %176, %6, %cst_35 {dimension_numbers = #tpu.dot_dimension_numbers<[1], [0], [0], [1], [0, 0, 1, 1], [], []>} : vector<8x128xf32>, vector<128x512xf32>, vector<8x512xf32> -> vector<8x512xf32>
    %179 = arith.addf %177, %178 : vector<8x512xf32>
    %180 = vector.extract_strided_slice %179 {offsets = [0, 0], sizes = [8, 128], strides = [1, 1]} : vector<8x512xf32> to vector<8x128xf32>
    %181 = arith.negf %180 : vector<8x128xf32>
    %182 = math.exp %181 : vector<8x128xf32>
    %cst_36 = arith.constant 1.000000e+00 : f32
    %183 = vector.broadcast %cst_36 : f32 to vector<8x128xf32>
    %184 = arith.addf %183, %182 : vector<8x128xf32>
    %185 = arith.divf %183, %184 : vector<8x128xf32>
    %186 = vector.extract_strided_slice %179 {offsets = [0, 128], sizes = [8, 128], strides = [1, 1]} : vector<8x512xf32> to vector<8x128xf32>
    %187 = arith.negf %186 : vector<8x128xf32>
    %188 = math.exp %187 : vector<8x128xf32>
    %cst_37 = arith.constant 1.000000e+00 : f32
    %189 = vector.broadcast %cst_37 : f32 to vector<8x128xf32>
    %190 = arith.addf %189, %188 : vector<8x128xf32>
    %191 = arith.divf %189, %190 : vector<8x128xf32>
    %192 = vector.extract_strided_slice %179 {offsets = [0, 256], sizes = [8, 128], strides = [1, 1]} : vector<8x512xf32> to vector<8x128xf32>
    %193 = math.tanh %192 : vector<8x128xf32>
    %194 = vector.extract_strided_slice %179 {offsets = [0, 384], sizes = [8, 128], strides = [1, 1]} : vector<8x512xf32> to vector<8x128xf32>
    %195 = arith.negf %194 : vector<8x128xf32>
    %196 = math.exp %195 : vector<8x128xf32>
    %cst_38 = arith.constant 1.000000e+00 : f32
    %197 = vector.broadcast %cst_38 : f32 to vector<8x128xf32>
    %198 = arith.addf %197, %196 : vector<8x128xf32>
    %199 = arith.divf %197, %198 : vector<8x128xf32>
    %200 = arith.mulf %191, %174 : vector<8x128xf32>
    %201 = arith.mulf %185, %193 : vector<8x128xf32>
    %202 = arith.addf %200, %201 : vector<8x128xf32>
    %203 = math.tanh %202 : vector<8x128xf32>
    %204 = arith.mulf %199, %203 : vector<8x128xf32>
    %205 = vector.extract_strided_slice %5 {offsets = [56, 0], sizes = [8, 512], strides = [1, 1]} : vector<64x512xf32> to vector<8x512xf32>
    %cst_39 = arith.constant dense<0.000000e+00> : vector<8x512xf32>
    %206 = tpu.matmul %204, %6, %cst_39 {dimension_numbers = #tpu.dot_dimension_numbers<[1], [0], [0], [1], [0, 0, 1, 1], [], []>} : vector<8x128xf32>, vector<128x512xf32>, vector<8x512xf32> -> vector<8x512xf32>
    %207 = arith.addf %205, %206 : vector<8x512xf32>
    %208 = vector.extract_strided_slice %207 {offsets = [0, 0], sizes = [8, 128], strides = [1, 1]} : vector<8x512xf32> to vector<8x128xf32>
    %209 = arith.negf %208 : vector<8x128xf32>
    %210 = math.exp %209 : vector<8x128xf32>
    %cst_40 = arith.constant 1.000000e+00 : f32
    %211 = vector.broadcast %cst_40 : f32 to vector<8x128xf32>
    %212 = arith.addf %211, %210 : vector<8x128xf32>
    %213 = arith.divf %211, %212 : vector<8x128xf32>
    %214 = vector.extract_strided_slice %207 {offsets = [0, 128], sizes = [8, 128], strides = [1, 1]} : vector<8x512xf32> to vector<8x128xf32>
    %215 = arith.negf %214 : vector<8x128xf32>
    %216 = math.exp %215 : vector<8x128xf32>
    %cst_41 = arith.constant 1.000000e+00 : f32
    %217 = vector.broadcast %cst_41 : f32 to vector<8x128xf32>
    %218 = arith.addf %217, %216 : vector<8x128xf32>
    %219 = arith.divf %217, %218 : vector<8x128xf32>
    %220 = vector.extract_strided_slice %207 {offsets = [0, 256], sizes = [8, 128], strides = [1, 1]} : vector<8x512xf32> to vector<8x128xf32>
    %221 = math.tanh %220 : vector<8x128xf32>
    %222 = vector.extract_strided_slice %207 {offsets = [0, 384], sizes = [8, 128], strides = [1, 1]} : vector<8x512xf32> to vector<8x128xf32>
    %223 = arith.negf %222 : vector<8x128xf32>
    %224 = math.exp %223 : vector<8x128xf32>
    %cst_42 = arith.constant 1.000000e+00 : f32
    %225 = vector.broadcast %cst_42 : f32 to vector<8x128xf32>
    %226 = arith.addf %225, %224 : vector<8x128xf32>
    %227 = arith.divf %225, %226 : vector<8x128xf32>
    %228 = arith.mulf %219, %202 : vector<8x128xf32>
    %229 = arith.mulf %213, %221 : vector<8x128xf32>
    %230 = arith.addf %228, %229 : vector<8x128xf32>
    %231 = math.tanh %230 : vector<8x128xf32>
    %232 = arith.mulf %227, %231 : vector<8x128xf32>
    %233 = vector.extract_strided_slice %0 {offsets = [56, 0], sizes = [8, 16], strides = [1, 1]} : vector<64x16xf32> to vector<8x16xf32>
    %c0_43 = arith.constant 0 : index
    %c0_44 = arith.constant 0 : index
    %234 = vector.load %arg8[%c0_43, %c0_44] : memref<16x512xf32, #tpu.memory_space<vmem>>, vector<16x512xf32>
    %cst_45 = arith.constant dense<0.000000e+00> : vector<8x512xf32>
    %235 = tpu.matmul %233, %234, %cst_45 {dimension_numbers = #tpu.dot_dimension_numbers<[1], [0], [0], [1], [0, 0, 1, 1], [], []>} : vector<8x16xf32>, vector<16x512xf32>, vector<8x512xf32> -> vector<8x512xf32>
    %c0_46 = arith.constant 0 : index
    %c0_47 = arith.constant 0 : index
    %236 = vector.load %arg3[%c0_46, %c0_47] : memref<8x128xf32, #tpu.memory_space<vmem>>, vector<8x128xf32>
    %c0_48 = arith.constant 0 : index
    %c0_49 = arith.constant 0 : index
    %237 = vector.load %arg9[%c0_48, %c0_49] : memref<128x512xf32, #tpu.memory_space<vmem>>, vector<128x512xf32>
    %cst_50 = arith.constant dense<0.000000e+00> : vector<8x512xf32>
    %238 = tpu.matmul %236, %237, %cst_50 {dimension_numbers = #tpu.dot_dimension_numbers<[1], [0], [0], [1], [0, 0, 1, 1], [], []>} : vector<8x128xf32>, vector<128x512xf32>, vector<8x512xf32> -> vector<8x512xf32>
    %239 = arith.addf %235, %238 : vector<8x512xf32>
    %c0_51 = arith.constant 0 : index
    %c0_52 = arith.constant 0 : index
    %240 = vector.load %arg10[%c0_51, %c0_52] : memref<1x512xf32, #tpu.memory_space<vmem>>, vector<1x512xf32>
    %241 = vector.broadcast %240 : vector<1x512xf32> to vector<8x512xf32>
    %242 = arith.addf %239, %241 : vector<8x512xf32>
    %c0_53 = arith.constant 0 : index
    %c0_54 = arith.constant 0 : index
    %243 = vector.load %arg4[%c0_53, %c0_54] : memref<8x128xf32, #tpu.memory_space<vmem>>, vector<8x128xf32>
    %244 = vector.extract_strided_slice %242 {offsets = [0, 0], sizes = [8, 128], strides = [1, 1]} : vector<8x512xf32> to vector<8x128xf32>
    %245 = arith.negf %244 : vector<8x128xf32>
    %246 = math.exp %245 : vector<8x128xf32>
    %cst_55 = arith.constant 1.000000e+00 : f32
    %247 = vector.broadcast %cst_55 : f32 to vector<8x128xf32>
    %248 = arith.addf %247, %246 : vector<8x128xf32>
    %249 = arith.divf %247, %248 : vector<8x128xf32>
    %250 = vector.extract_strided_slice %242 {offsets = [0, 128], sizes = [8, 128], strides = [1, 1]} : vector<8x512xf32> to vector<8x128xf32>
    %251 = arith.negf %250 : vector<8x128xf32>
    %252 = math.exp %251 : vector<8x128xf32>
    %cst_56 = arith.constant 1.000000e+00 : f32
    %253 = vector.broadcast %cst_56 : f32 to vector<8x128xf32>
    %254 = arith.addf %253, %252 : vector<8x128xf32>
    %255 = arith.divf %253, %254 : vector<8x128xf32>
    %256 = vector.extract_strided_slice %242 {offsets = [0, 256], sizes = [8, 128], strides = [1, 1]} : vector<8x512xf32> to vector<8x128xf32>
    %257 = math.tanh %256 : vector<8x128xf32>
    %258 = vector.extract_strided_slice %242 {offsets = [0, 384], sizes = [8, 128], strides = [1, 1]} : vector<8x512xf32> to vector<8x128xf32>
    %259 = arith.negf %258 : vector<8x128xf32>
    %260 = math.exp %259 : vector<8x128xf32>
    %cst_57 = arith.constant 1.000000e+00 : f32
    %261 = vector.broadcast %cst_57 : f32 to vector<8x128xf32>
    %262 = arith.addf %261, %260 : vector<8x128xf32>
    %263 = arith.divf %261, %262 : vector<8x128xf32>
    %264 = arith.mulf %255, %243 : vector<8x128xf32>
    %265 = arith.mulf %249, %257 : vector<8x128xf32>
    %266 = arith.addf %264, %265 : vector<8x128xf32>
    %267 = math.tanh %266 : vector<8x128xf32>
    %268 = arith.mulf %263, %267 : vector<8x128xf32>
    %c0_58 = arith.constant 0 : index
    %c0_59 = arith.constant 0 : index
    %269 = vector.load %arg11[%c0_58, %c0_59] : memref<128x128xf32, #tpu.memory_space<vmem>>, vector<128x128xf32>
    %cst_60 = arith.constant dense<0.000000e+00> : vector<8x128xf32>
    %270 = tpu.matmul %232, %269, %cst_60 {dimension_numbers = #tpu.dot_dimension_numbers<[1], [0], [0], [1], [0, 0, 1, 1], [], []>} : vector<8x128xf32>, vector<128x128xf32>, vector<8x128xf32> -> vector<8x128xf32>
    %c0_61 = arith.constant 0 : index
    %c0_62 = arith.constant 0 : index
    %271 = vector.load %arg12[%c0_61, %c0_62] : memref<128x128xf32, #tpu.memory_space<vmem>>, vector<128x128xf32>
    %cst_63 = arith.constant dense<0.000000e+00> : vector<8x128xf32>
    %272 = tpu.matmul %268, %271, %cst_63 {dimension_numbers = #tpu.dot_dimension_numbers<[1], [0], [0], [1], [0, 0, 1, 1], [], []>} : vector<8x128xf32>, vector<128x128xf32>, vector<8x128xf32> -> vector<8x128xf32>
    %273 = arith.addf %270, %272 : vector<8x128xf32>
    %c0_64 = arith.constant 0 : index
    %c0_65 = arith.constant 0 : index
    %274 = vector.load %arg13[%c0_64, %c0_65] : memref<1x128xf32, #tpu.memory_space<vmem>>, vector<1x128xf32>
    %275 = vector.broadcast %274 : vector<1x128xf32> to vector<8x128xf32>
    %276 = arith.addf %273, %275 : vector<8x128xf32>
    %c0_66 = arith.constant 0 : index
    %c0_67 = arith.constant 0 : index
    %277 = vector.load %arg14[%c0_66, %c0_67] : memref<8x128xf32, #tpu.memory_space<vmem>>, vector<8x128xf32>
    tpu.vector_store %arg14[%c0_66, %c0_67], %276 {strides = array<i32>} : memref<8x128xf32, #tpu.memory_space<vmem>>, vector<8x128xf32>,
    return
  }
}

</mosaic_0001>

<llo_original>
// kernel: tpu_custom_call.1
$region0: #{tpu_custom_call.1}
  #allocation0 [shape = 'u32[]', space=smem, size = 0x4, offset = 0x4, fixed_abs, tag = 'smem constant byte address 0x4 - core index']
  #allocation1 [shape = 'u32[72,128]{1,0:T(1,128)}', space=vmem, size = 0x9000, scoped, tag = 'internal scratch']
  %s0 = inlined_call_operand.vmem [shape: f32[64,16], index: 0, kind: input, shape index: {}]
  %s1 = inlined_call_operand.vmem [shape: f32[8,128], index: 1, kind: input, shape index: {}]
  %s2 = inlined_call_operand.vmem [shape: f32[8,128], index: 2, kind: input, shape index: {}]
  %s3 = inlined_call_operand.hbm [shape: f32[8,128], index: 3, kind: input, shape index: {}]
  %s4 = inlined_call_operand.hbm [shape: f32[8,128], index: 4, kind: input, shape index: {}]
  %s5 = inlined_call_operand.vmem [shape: f32[16,512], index: 5, kind: input, shape index: {}]
  %s6 = inlined_call_operand.hbm [shape: f32[128,512], index: 6, kind: input, shape index: {}]
  %s7 = inlined_call_operand.vmem [shape: f32[1,512], index: 7, kind: input, shape index: {}]
  %s8 = inlined_call_operand.hbm [shape: f32[16,512], index: 8, kind: input, shape index: {}]
  %s9 = inlined_call_operand.hbm [shape: f32[128,512], index: 9, kind: input, shape index: {}]
  %s10 = inlined_call_operand.vmem [shape: f32[1,512], index: 10, kind: input, shape index: {}]
  %s11 = inlined_call_operand.hbm [shape: f32[128,128], index: 11, kind: input, shape index: {}]
  %s12 = inlined_call_operand.hbm [shape: f32[128,128], index: 12, kind: input, shape index: {}]
  %s13 = inlined_call_operand.vmem [shape: f32[1,128], index: 13, kind: input, shape index: {}]
  %s14 = inlined_call_operand.hbm [shape: f32[8,128], index: 14, kind: output, shape index: {}]
  %s15 = sld [smem:[#allocation0]]
  $region94: #{tpu_custom_call.1} parent=0
    _
  %s17 = ssub.s32 1, %s15
  %s18 = scalar_select 0, %s17, %s15
  $region1: #{tpu_custom_call.1} parent=0
    #allocation2 [shape = 'u8[4096]{0}', space=vmem, size = 0x1000, scoped, tag = 'input window, operand 3, single buffered']
    #allocation3 [shape = 's32[1]{0}', space=sflag, size = 0x4, scoped, tag = 'scoped memory for tpu_custom_call.1']
    #allocation4 [shape = 's32[1]{0}', space=sflag, size = 0x4, scoped, tag = 'scoped memory for tpu_custom_call.1']
    #allocation5 [shape = 'u8[4096]{0}', space=vmem, size = 0x1000, scoped, tag = 'input window, operand 4, single buffered']
    #allocation6 [shape = 's32[1]{0}', space=sflag, size = 0x4, scoped, tag = 'scoped memory for tpu_custom_call.1']
    #allocation7 [shape = 'u8[262144]{0}', space=vmem, size = 0x40000, scoped, tag = 'input window, operand 6, single buffered']
    #allocation8 [shape = 'u8[32768]{0}', space=vmem, size = 0x8000, scoped, tag = 'input window, operand 8, single buffered']
    #allocation9 [shape = 's32[1]{0}', space=sflag, size = 0x4, scoped, tag = 'scoped memory for tpu_custom_call.1']
    #allocation10 [shape = 'u8[262144]{0}', space=vmem, size = 0x40000, scoped, tag = 'input window, operand 9, single buffered']
    #allocation11 [shape = 'u8[65536]{0}', space=vmem, size = 0x10000, scoped, tag = 'input window, operand 11, single buffered']
    #allocation12 [shape = 's32[1]{0}', space=sflag, size = 0x4, scoped, tag = 'scoped memory for tpu_custom_call.1']
    #allocation13 [shape = 'u8[65536]{0}', space=vmem, size = 0x10000, scoped, tag = 'input window, operand 12, single buffered']
    #allocation14 [shape = 'u8[4096]{0}', space=vmem, size = 0x1000, scoped, tag = 'output window, operand 0, single buffered']
    %19 = vsyncpa [#allocation3], 0
    %20 = vsyncpa [#allocation6], 0
    %21 = vsyncpa [#allocation9], 0
    %22 = vsyncpa [#allocation12], 0
    %23 = vsyncpa [#allocation4], 0
    // Predicated region
    $region2: #{tpu_custom_call.1} parent=1 // pred_check
      _
    $region3: #{tpu_custom_call.1} parent=1 // pred_check_branch
      %25 = sbr.rel (0) target = $region5
    $region4: #{tpu_custom_call.1} parent=1 // pred_region
      _
    $region5: #{tpu_custom_call.1} parent=1 // pred_fallthru
      _
    // Predicated region
    $region6: #{tpu_custom_call.1} parent=1 // pred_check
      _
    $region7: #{tpu_custom_call.1} parent=1 // pred_check_branch
      %27 = sbr.rel (0) target = $region9
    $region8: #{tpu_custom_call.1} parent=1 // pred_region
      _
    $region9: #{tpu_custom_call.1} parent=1 // pred_fallthru
      _
    // Predicated region
    $region10: #{tpu_custom_call.1} parent=1 // pred_check
      _
    $region11: #{tpu_custom_call.1} parent=1 // pred_check_branch
      %29 = sbr.rel (0) target = $region13
    $region12: #{tpu_custom_call.1} parent=1 // pred_region
      _
    $region13: #{tpu_custom_call.1} parent=1 // pred_fallthru
      _
    // Predicated region
    $region14: #{tpu_custom_call.1} parent=1 // pred_check
      _
    $region15: #{tpu_custom_call.1} parent=1 // pred_check_branch
      %31 = sbr.rel (0) target = $region17
    $region16: #{tpu_custom_call.1} parent=1 // pred_region
      %33 = vsyncadd [#allocation3], 0
      %s35 = sshll.u32 %s3, 4
      %s36 = int_to_ptr.hbm [resolvable:$true] %s35
      %s37 = sshll.u32 [#allocation2], 4
      %s38 = int_to_ptr.vmem [resolvable:$true] %s37
      %40 = dma.hbm_to_vmem [thread:$0]  %s36, 128, %s38, [#allocation3]
    $region17: #{tpu_custom_call.1} parent=1 // pred_fallthru
      _
    // Predicated region
    $region18: #{tpu_custom_call.1} parent=1 // pred_check
      _
    $region19: #{tpu_custom_call.1} parent=1 // pred_check_branch
      %42 = sbr.rel (0) target = $region21
    $region20: #{tpu_custom_call.1} parent=1 // pred_region
      %44 = vsyncadd [#allocation6], 0
      %s46 = sshll.u32 %s4, 4
      %s47 = int_to_ptr.hbm [resolvable:$true] %s46
      %s48 = sshll.u32 [#allocation5], 4
      %s49 = int_to_ptr.vmem [resolvable:$true] %s48
      %51 = dma.hbm_to_vmem [thread:$0]  %s47, 128, %s49, [#allocation6]
    $region21: #{tpu_custom_call.1} parent=1 // pred_fallthru
      _
    // Predicated region
    $region22: #{tpu_custom_call.1} parent=1 // pred_check
      _
    $region23: #{tpu_custom_call.1} parent=1 // pred_check_branch
      %53 = sbr.rel (0) target = $region25
    $region24: #{tpu_custom_call.1} parent=1 // pred_region
      _
    $region25: #{tpu_custom_call.1} parent=1 // pred_fallthru
      _
    // Predicated region
    $region26: #{tpu_custom_call.1} parent=1 // pred_check
      _
    $region27: #{tpu_custom_call.1} parent=1 // pred_check_branch
      %55 = sbr.rel (0) target = $region29
    $region28: #{tpu_custom_call.1} parent=1 // pred_region
      %57 = vsyncadd [#allocation6], 0
      %s58 = sshll.u32 %s6, 4
      %s59 = int_to_ptr.hbm [resolvable:$true] %s58
      %s60 = sshll.u32 [#allocation7], 4
      %s61 = int_to_ptr.vmem [resolvable:$true] %s60
      %66 = dma.hbm_to_vmem [thread:$0]  %s59, 8192, %s61, [#allocation6], 512, 512, 32
    $region29: #{tpu_custom_call.1} parent=1 // pred_fallthru
      _
    // Predicated region
    $region30: #{tpu_custom_call.1} parent=1 // pred_check
      _
    $region31: #{tpu_custom_call.1} parent=1 // pred_check_branch
      %68 = sbr.rel (0) target = $region33
    $region32: #{tpu_custom_call.1} parent=1 // pred_region
      _
    $region33: #{tpu_custom_call.1} parent=1 // pred_fallthru
      _
    // Predicated region
    $region34: #{tpu_custom_call.1} parent=1 // pred_check
      _
    $region35: #{tpu_custom_call.1} parent=1 // pred_check_branch
      %70 = sbr.rel (0) target = $region37
    $region36: #{tpu_custom_call.1} parent=1 // pred_region
      %72 = vsyncadd [#allocation9], 0
      %s73 = sshll.u32 %s8, 4
      %s74 = int_to_ptr.hbm [resolvable:$true] %s73
      %s75 = sshll.u32 [#allocation8], 4
      %s76 = int_to_ptr.vmem [resolvable:$true] %s75
      %81 = dma.hbm_to_vmem [thread:$0]  %s74, 1024, %s76, [#allocation9], 512, 512, 32
    $region37: #{tpu_custom_call.1} parent=1 // pred_fallthru
      _
    // Predicated region
    $region38: #{tpu_custom_call.1} parent=1 // pred_check
      _
    $region39: #{tpu_custom_call.1} parent=1 // pred_check_branch
      %83 = sbr.rel (0) target = $region41
    $region40: #{tpu_custom_call.1} parent=1 // pred_region
      %85 = vsyncadd [#allocation9], 0
      %s86 = sshll.u32 %s9, 4
      %s87 = int_to_ptr.hbm [resolvable:$true] %s86
      %s88 = sshll.u32 [#allocation10], 4
      %s89 = int_to_ptr.vmem [resolvable:$true] %s88
      %94 = dma.hbm_to_vmem [thread:$0]  %s87, 8192, %s89, [#allocation9], 512, 512, 32
    $region41: #{tpu_custom_call.1} parent=1 // pred_fallthru
      _
    // Predicated region
    $region42: #{tpu_custom_call.1} parent=1 // pred_check
      _
    $region43: #{tpu_custom_call.1} parent=1 // pred_check_branch
      %96 = sbr.rel (0) target = $region45
    $region44: #{tpu_custom_call.1} parent=1 // pred_region
      _
    $region45: #{tpu_custom_call.1} parent=1 // pred_fallthru
      _
    // Predicated region
    $region46: #{tpu_custom_call.1} parent=1 // pred_check
      _
    $region47: #{tpu_custom_call.1} parent=1 // pred_check_branch
      %98 = sbr.rel (0) target = $region49
    $region48: #{tpu_custom_call.1} parent=1 // pred_region
      %100 = vsyncadd [#allocation12], 0
      %s101 = sshll.u32 %s11, 4
      %s102 = int_to_ptr.hbm [resolvable:$true] %s101
      %s103 = sshll.u32 [#allocation11], 4
      %s104 = int_to_ptr.vmem [resolvable:$true] %s103
      %109 = dma.hbm_to_vmem [thread:$0]  %s102, 2048, %s104, [#allocation12], 128, 128, 8
    $region49: #{tpu_custom_call.1} parent=1 // pred_fallthru
      _
    // Predicated region
    $region50: #{tpu_custom_call.1} parent=1 // pred_check
      _
    $region51: #{tpu_custom_call.1} parent=1 // pred_check_branch
      %111 = sbr.rel (0) target = $region53
    $region52: #{tpu_custom_call.1} parent=1 // pred_region
      %113 = vsyncadd [#allocation12], 0
      %s114 = sshll.u32 %s12, 4
      %s115 = int_to_ptr.hbm [resolvable:$true] %s114
      %s116 = sshll.u32 [#allocation13], 4
      %s117 = int_to_ptr.vmem [resolvable:$true] %s116
      %122 = dma.hbm_to_vmem [thread:$0]  %s115, 2048, %s117, [#allocation12], 128, 128, 8
    $region53: #{tpu_custom_call.1} parent=1 // pred_fallthru
      _
    // Predicated region
    $region54: #{tpu_custom_call.1} parent=1 // pred_check
      _
    $region55: #{tpu_custom_call.1} parent=1 // pred_check_branch
      %124 = sbr.rel (0) target = $region57
    $region56: #{tpu_custom_call.1} parent=1 // pred_region
      _
    $region57: #{tpu_custom_call.1} parent=1 // pred_fallthru
      _
    // Predicated region
    $region58: #{tpu_custom_call.1} parent=1 // pred_check
      _
    $region59: #{tpu_custom_call.1} parent=1 // pred_check_branch
      %126 = sbr.rel (0) target = $region61
    $region60: #{tpu_custom_call.1} parent=1 // pred_region
      %128 = dma.done [#allocation3], 128
    $region61: #{tpu_custom_call.1} parent=1 // pred_fallthru
      _
    // Predicated region
    $region62: #{tpu_custom_call.1} parent=1 // pred_check
      _
    $region63: #{tpu_custom_call.1} parent=1 // pred_check_branch
      %130 = sbr.rel (0) target = $region65
    $region64: #{tpu_custom_call.1} parent=1 // pred_region
      %132 = dma.done [#allocation6], 128
    $region65: #{tpu_custom_call.1} parent=1 // pred_fallthru
      _
    // Predicated region
    $region66: #{tpu_custom_call.1} parent=1 // pred_check
      _
    $region67: #{tpu_custom_call.1} parent=1 // pred_check_branch
      %134 = sbr.rel (0) target = $region69
    $region68: #{tpu_custom_call.1} parent=1 // pred_region
      %136 = dma.done [#allocation6], 8192
    $region69: #{tpu_custom_call.1} parent=1 // pred_fallthru
      _
    // Predicated region
    $region70: #{tpu_custom_call.1} parent=1 // pred_check
      _
    $region71: #{tpu_custom_call.1} parent=1 // pred_check_branch
      %138 = sbr.rel (0) target = $region73
    $region72: #{tpu_custom_call.1} parent=1 // pred_region
      %140 = dma.done [#allocation9], 1024
    $region73: #{tpu_custom_call.1} parent=1 // pred_fallthru
      _
    // Predicated region
    $region74: #{tpu_custom_call.1} parent=1 // pred_check
      _
    $region75: #{tpu_custom_call.1} parent=1 // pred_check_branch
      %142 = sbr.rel (0) target = $region77
    $region76: #{tpu_custom_call.1} parent=1 // pred_region
      %144 = dma.done [#allocation9], 8192
    $region77: #{tpu_custom_call.1} parent=1 // pred_fallthru
      _
    // Predicated region
    $region78: #{tpu_custom_call.1} parent=1 // pred_check
      _
    $region79: #{tpu_custom_call.1} parent=1 // pred_check_branch
      %146 = sbr.rel (0) target = $region81
    $region80: #{tpu_custom_call.1} parent=1 // pred_region
      %148 = dma.done [#allocation12], 2048
    $region81: #{tpu_custom_call.1} parent=1 // pred_fallthru
      _
    // Predicated region
    $region82: #{tpu_custom_call.1} parent=1 // pred_check
      _
    $region83: #{tpu_custom_call.1} parent=1 // pred_check_branch
      %150 = sbr.rel (0) target = $region85
    $region84: #{tpu_custom_call.1} parent=1 // pred_region
      %152 = dma.done [#allocation12], 2048
    $region85: #{tpu_custom_call.1} parent=1 // pred_fallthru
      _
    %v153 = vld [vmem:[%s0] sm:$0xff]
    %v154 = vld [vmem:[%s0 + $0x8] sm:$0xff]
    %v155 = vld [vmem:[%s0 + $0x10] sm:$0xff]
    %v156 = vld [vmem:[%s0 + $0x18] sm:$0xff]
    %v157 = vld [vmem:[%s0 + $0x20] sm:$0xff]
    %v158 = vld [vmem:[%s0 + $0x28] sm:$0xff]
    %v159 = vld [vmem:[%s0 + $0x30] sm:$0xff]
    %v160 = vld [vmem:[%s0 + $0x38] sm:$0xff]
    %v161 = vld [vmem:[%s5] sm:$0xff]
    %v162 = vld [vmem:[%s5 + $0x8] sm:$0xff]
    %v163 = vld [vmem:[%s5 + $0x10] sm:$0xff]
    %v164 = vld [vmem:[%s5 + $0x18] sm:$0xff]
    %v165 = vld [vmem:[%s5 + $0x20] sm:$0xff]
    %v166 = vld [vmem:[%s5 + $0x28] sm:$0xff]
    %v167 = vld [vmem:[%s5 + $0x30] sm:$0xff]
    %v168 = vld [vmem:[%s5 + $0x38] sm:$0xff]
    %v169 = vld [vmem:[%s7] sm:$0xf]
    %v171 = vperm.slane %v169, 0
    %v172 = vperm.slane %v169, 1
    %v173 = vperm.slane %v169, 2
    %v174 = vperm.slane %v169, 3
    %vm179 = vcmask 130048
    %v181 = vsel %vm179, %v153, 0
    %v184 = vsel %vm179, %v154, 0
    %v187 = vsel %vm179, %v155, 0
    %v190 = vsel %vm179, %v156, 0
    %v193 = vsel %vm179, %v157, 0
    %v196 = vsel %vm179, %v158, 0
    %v199 = vsel %vm179, %v159, 0
    %v202 = vsel %vm179, %v160, 0
    %204 = vmatpush.msra.mxu0 0.0
    %205 = vmatpush.msra.mxu0 0.0
    %206 = vmatpush.msra.mxu0 0.0
    %207 = vmatpush.msra.mxu0 0.0
    %208 = vmatpush.msra.mxu0 0.0
    %209 = vmatpush.msra.mxu0 0.0
    %210 = vmatpush.msra.mxu0 0.0
    %211 = vmatpush.msra.mxu0 0.0
    %212 = vmatpush.msra.mxu0 0.0
    %213 = vmatpush.msra.mxu0 0.0
    %214 = vmatpush.msra.mxu0 0.0
    %215 = vmatpush.msra.mxu0 0.0
    %216 = vmatpush.msra.mxu0 0.0
    %217 = vmatpush.msra.mxu0 0.0
    %218 = vmatpush.msra.mxu0 %v165
    %219 = vmatpush.msra.mxu0 %v161
    %220 = vmatmul.f32.gmra.mxu0 %v181
    %v221 = vpop.f32.mrf.mxu0
    %v222 = vadd.f32 %v171, %v221
    %223 = vmatmul.f32.gmra.mxu0 %v184
    %v224 = vpop.f32.mrf.mxu0
    %v225 = vadd.f32 %v171, %v224
    %226 = vmatmul.f32.gmra.mxu0 %v187
    %v227 = vpop.f32.mrf.mxu0
    %v228 = vadd.f32 %v171, %v227
    %229 = vmatmul.f32.gmra.mxu0 %v190
    %v230 = vpop.f32.mrf.mxu0
    %v231 = vadd.f32 %v171, %v230
    %232 = vmatmul.f32.gmra.mxu0 %v193
    %v233 = vpop.f32.mrf.mxu0
    %v234 = vadd.f32 %v171, %v233
    %235 = vmatmul.f32.gmra.mxu0 %v196
    %v236 = vpop.f32.mrf.mxu0
    %v237 = vadd.f32 %v171, %v236
    %238 = vmatmul.f32.gmra.mxu0 %v199
    %v239 = vpop.f32.mrf.mxu0
    %v240 = vadd.f32 %v171, %v239
    %241 = vmatmul.f32.gmra.mxu0 %v202
    %v242 = vpop.f32.mrf.mxu0
    %v243 = vadd.f32 %v171, %v242
    %244 = vdwg.mxu0
    %245 = vmatpush.msra.mxu0 0.0
    %246 = vmatpush.msra.mxu0 0.0
    %247 = vmatpush.msra.mxu0 0.0
    %248 = vmatpush.msra.mxu0 0.0
    %249 = vmatpush.msra.mxu0 0.0
    %250 = vmatpush.msra.mxu0 0.0
    %251 = vmatpush.msra.mxu0 0.0
    %252 = vmatpush.msra.mxu0 0.0
    %253 = vmatpush.msra.mxu0 0.0
    %254 = vmatpush.msra.mxu0 0.0
    %255 = vmatpush.msra.mxu0 0.0
    %256 = vmatpush.msra.mxu0 0.0
    %257 = vmatpush.msra.mxu0 0.0
    %258 = vmatpush.msra.mxu0 0.0
    %259 = vmatpush.msra.mxu0 %v166
    %260 = vmatpush.msra.mxu0 %v162
    %261 = vmatmul.f32.gmra.mxu0 %v181
    %v262 = vpop.f32.mrf.mxu0
    %v263 = vadd.f32 %v172, %v262
    %264 = vmatmul.f32.gmra.mxu0 %v184
    %v265 = vpop.f32.mrf.mxu0
    %v266 = vadd.f32 %v172, %v265
    %267 = vmatmul.f32.gmra.mxu0 %v187
    %v268 = vpop.f32.mrf.mxu0
    %v269 = vadd.f32 %v172, %v268
    %270 = vmatmul.f32.gmra.mxu0 %v190
    %v271 = vpop.f32.mrf.mxu0
    %v272 = vadd.f32 %v172, %v271
    %273 = vmatmul.f32.gmra.mxu0 %v193
    %v274 = vpop.f32.mrf.mxu0
    %v275 = vadd.f32 %v172, %v274
    %276 = vmatmul.f32.gmra.mxu0 %v196
    %v277 = vpop.f32.mrf.mxu0
    %v278 = vadd.f32 %v172, %v277
    %279 = vmatmul.f32.gmra.mxu0 %v199
    %v280 = vpop.f32.mrf.mxu0
    %v281 = vadd.f32 %v172, %v280
    %282 = vmatmul.f32.gmra.mxu0 %v202
    %v283 = vpop.f32.mrf.mxu0
    %v284 = vadd.f32 %v172, %v283
    %285 = vdwg.mxu0
    %286 = vmatpush.msra.mxu0 0.0
    %287 = vmatpush.msra.mxu0 0.0
    %288 = vmatpush.msra.mxu0 0.0
    %289 = vmatpush.msra.mxu0 0.0
    %290 = vmatpush.msra.mxu0 0.0
    %291 = vmatpush.msra.mxu0 0.0
    %292 = vmatpush.msra.mxu0 0.0
    %293 = vmatpush.msra.mxu0 0.0
    %294 = vmatpush.msra.mxu0 0.0
    %295 = vmatpush.msra.mxu0 0.0
    %296 = vmatpush.msra.mxu0 0.0
    %297 = vmatpush.msra.mxu0 0.0
    %298 = vmatpush.msra.mxu0 0.0
    %299 = vmatpush.msra.mxu0 0.0
    %300 = vmatpush.msra.mxu0 %v167
    %301 = vmatpush.msra.mxu0 %v163
    %302 = vmatmul.f32.gmra.mxu0 %v181
    %v303 = vpop.f32.mrf.mxu0
    %v304 = vadd.f32 %v173, %v303
    %305 = vmatmul.f32.gmra.mxu0 %v184
    %v306 = vpop.f32.mrf.mxu0
    %v307 = vadd.f32 %v173, %v306
    %308 = vmatmul.f32.gmra.mxu0 %v187
    %v309 = vpop.f32.mrf.mxu0
    %v310 = vadd.f32 %v173, %v309
    %311 = vmatmul.f32.gmra.mxu0 %v190
    %v312 = vpop.f32.mrf.mxu0
    %v313 = vadd.f32 %v173, %v312
    %314 = vmatmul.f32.gmra.mxu0 %v193
    %v315 = vpop.f32.mrf.mxu0
    %v316 = vadd.f32 %v173, %v315
    %317 = vmatmul.f32.gmra.mxu0 %v196
    %v318 = vpop.f32.mrf.mxu0
    %v319 = vadd.f32 %v173, %v318
    %320 = vmatmul.f32.gmra.mxu0 %v199
    %v321 = vpop.f32.mrf.mxu0
    %v322 = vadd.f32 %v173, %v321
    %323 = vmatmul.f32.gmra.mxu0 %v202
    %v324 = vpop.f32.mrf.mxu0
    %v325 = vadd.f32 %v173, %v324
    %326 = vdwg.mxu0
    %327 = vmatpush.msra.mxu0 0.0
    %328 = vmatpush.msra.mxu0 0.0
    %329 = vmatpush.msra.mxu0 0.0
    %330 = vmatpush.msra.mxu0 0.0
    %331 = vmatpush.msra.mxu0 0.0
    %332 = vmatpush.msra.mxu0 0.0
    %333 = vmatpush.msra.mxu0 0.0
    %334 = vmatpush.msra.mxu0 0.0
    %335 = vmatpush.msra.mxu0 0.0
    %336 = vmatpush.msra.mxu0 0.0
    %337 = vmatpush.msra.mxu0 0.0
    %338 = vmatpush.msra.mxu0 0.0
    %339 = vmatpush.msra.mxu0 0.0
    %340 = vmatpush.msra.mxu0 0.0
    %341 = vmatpush.msra.mxu0 %v168
    %342 = vmatpush.msra.mxu0 %v164
    %343 = vmatmul.f32.gmra.mxu0 %v181
    %v344 = vpop.f32.mrf.mxu0
    %v345 = vadd.f32 %v174, %v344
    %346 = vmatmul.f32.gmra.mxu0 %v184
    %v347 = vpop.f32.mrf.mxu0
    %v348 = vadd.f32 %v174, %v347
    %349 = vmatmul.f32.gmra.mxu0 %v187
    %v350 = vpop.f32.mrf.mxu0
    %v351 = vadd.f32 %v174, %v350
    %352 = vmatmul.f32.gmra.mxu0 %v190
    %v353 = vpop.f32.mrf.mxu0
    %v354 = vadd.f32 %v174, %v353
    %355 = vmatmul.f32.gmra.mxu0 %v193
    %v356 = vpop.f32.mrf.mxu0
    %v357 = vadd.f32 %v174, %v356
    %358 = vmatmul.f32.gmra.mxu0 %v196
    %v359 = vpop.f32.mrf.mxu0
    %v360 = vadd.f32 %v174, %v359
    %361 = vmatmul.f32.gmra.mxu0 %v199
    %v362 = vpop.f32.mrf.mxu0
    %v363 = vadd.f32 %v174, %v362
    %364 = vmatmul.f32.gmra.mxu0 %v202
    %v365 = vpop.f32.mrf.mxu0
    %v366 = vadd.f32 %v174, %v365
    %367 = vdwg.mxu0
    %v368 = vld [vmem:[#allocation7] sm:$0xff]
    %v369 = vld [vmem:[#allocation7 + $0x8] sm:$0xff]
    %v370 = vld [vmem:[#allocation7 + $0x10] sm:$0xff]
    %v371 = vld [vmem:[#allocation7 + $0x18] sm:$0xff]
    %v372 = vld [vmem:[#allocation7 + $0x20] sm:$0xff]
    %v373 = vld [vmem:[#allocation7 + $0x28] sm:$0xff]
    %v374 = vld [vmem:[#allocation7 + $0x30] sm:$0xff]
    %v375 = vld [vmem:[#allocation7 + $0x38] sm:$0xff]
    %v376 = vld [vmem:[#allocation7 + $0x40] sm:$0xff]
    %v377 = vld [vmem:[#allocation7 + $0x48] sm:$0xff]
    %v378 = vld [vmem:[#allocation7 + $0x50] sm:$0xff]
    %v379 = vld [vmem:[#allocation7 + $0x58] sm:$0xff]
    %v380 = vld [vmem:[#allocation7 + $0x60] sm:$0xff]
    %v381 = vld [vmem:[#allocation7 + $0x68] sm:$0xff]
    %v382 = vld [vmem:[#allocation7 + $0x70] sm:$0xff]
    %v383 = vld [vmem:[#allocation7 + $0x78] sm:$0xff]
    %v384 = vld [vmem:[#allocation7 + $0x80] sm:$0xff]
    %v385 = vld [vmem:[#allocation7 + $0x88] sm:$0xff]
    %v386 = vld [vmem:[#allocation7 + $0x90] sm:$0xff]
    %v387 = vld [vmem:[#allocation7 + $0x98] sm:$0xff]
    %v388 = vld [vmem:[#allocation7 + $0xa0] sm:$0xff]
    %v389 = vld [vmem:[#allocation7 + $0xa8] sm:$0xff]
    %v390 = vld [vmem:[#allocation7 + $0xb0] sm:$0xff]
    %v391 = vld [vmem:[#allocation7 + $0xb8] sm:$0xff]
    %v392 = vld [vmem:[#allocation7 + $0xc0] sm:$0xff]
    %v393 = vld [vmem:[#allocation7 + $0xc8] sm:$0xff]
    %v394 = vld [vmem:[#allocation7 + $0xd0] sm:$0xff]
    %v395 = vld [vmem:[#allocation7 + $0xd8] sm:$0xff]
    %v396 = vld [vmem:[#allocation7 + $0xe0] sm:$0xff]
    %v397 = vld [vmem:[#allocation7 + $0xe8] sm:$0xff]
    %v398 = vld [vmem:[#allocation7 + $0xf0] sm:$0xff]
    %v399 = vld [vmem:[#allocation7 + $0xf8] sm:$0xff]
    %v400 = vld [vmem:[#allocation7 + $0x100] sm:$0xff]
    %v401 = vld [vmem:[#allocation7 + $0x108] sm:$0xff]
    %v402 = vld [vmem:[#allocation7 + $0x110] sm:$0xff]
    %v403 = vld [vmem:[#allocation7 + $0x118] sm:$0xff]
    %v404 = vld [vmem:[#allocation7 + $0x120] sm:$0xff]
    %v405 = vld [vmem:[#allocation7 + $0x128] sm:$0xff]
    %v406 = vld [vmem:[#allocation7 + $0x130] sm:$0xff]
    %v407 = vld [vmem:[#allocation7 + $0x138] sm:$0xff]
    %v408 = vld [vmem:[#allocation7 + $0x140] sm:$0xff]
    %v409 = vld [vmem:[#allocation7 + $0x148] sm:$0xff]
    %v410 = vld [vmem:[#allocation7 + $0x150] sm:$0xff]
    %v411 = vld [vmem:[#allocation7 + $0x158] sm:$0xff]
    %v412 = vld [vmem:[#allocation7 + $0x160] sm:$0xff]
    %v413 = vld [vmem:[#allocation7 + $0x168] sm:$0xff]
    %v414 = vld [vmem:[#allocation7 + $0x170] sm:$0xff]
    %v415 = vld [vmem:[#allocation7 + $0x178] sm:$0xff]
    %v416 = vld [vmem:[#allocation7 + $0x180] sm:$0xff]
    %v417 = vld [vmem:[#allocation7 + $0x188] sm:$0xff]
    %v418 = vld [vmem:[#allocation7 + $0x190] sm:$0xff]
    %v419 = vld [vmem:[#allocation7 + $0x198] sm:$0xff]
    %v420 = vld [vmem:[#allocation7 + $0x1a0] sm:$0xff]
    %v421 = vld [vmem:[#allocation7 + $0x1a8] sm:$0xff]
    %v422 = vld [vmem:[#allocation7 + $0x1b0] sm:$0xff]
    %v423 = vld [vmem:[#allocation7 + $0x1b8] sm:$0xff]
    %v424 = vld [vmem:[#allocation7 + $0x1c0] sm:$0xff]
    %v425 = vld [vmem:[#allocation7 + $0x1c8] sm:$0xff]
    %v426 = vld [vmem:[#allocation7 + $0x1d0] sm:$0xff]
    %v427 = vld [vmem:[#allocation7 + $0x1d8] sm:$0xff]
    %v428 = vld [vmem:[#allocation7 + $0x1e0] sm:$0xff]
    %v429 = vld [vmem:[#allocation7 + $0x1e8] sm:$0xff]
    %v430 = vld [vmem:[#allocation7 + $0x1f0] sm:$0xff]
    %v431 = vld [vmem:[#allocation7 + $0x1f8] sm:$0xff]
    %v432 = vld [vmem:[%s1] sm:$0xff]
    %v433 = vld [vmem:[%s2] sm:$0xff]
    %434 = vmatpush.msra.mxu0 %v428
    %435 = vmatpush.msra.mxu0 %v424
    %436 = vmatpush.msra.mxu0 %v420
    %437 = vmatpush.msra.mxu0 %v416
    %438 = vmatpush.msra.mxu0 %v412
    %439 = vmatpush.msra.mxu0 %v408
    %440 = vmatpush.msra.mxu0 %v404
    %441 = vmatpush.msra.mxu0 %v400
    %442 = vmatpush.msra.mxu0 %v396
    %443 = vmatpush.msra.mxu0 %v392
    %444 = vmatpush.msra.mxu0 %v388
    %445 = vmatpush.msra.mxu0 %v384
    %446 = vmatpush.msra.mxu0 %v380
    %447 = vmatpush.msra.mxu0 %v376
    %448 = vmatpush.msra.mxu0 %v372
    %449 = vmatpush.msra.mxu0 %v368
    %450 = vmatmul.f32.gmra.mxu0 %v432
    %v451 = vpop.f32.mrf.mxu0
    %v452 = vadd.f32 0.0, %v451
    %453 = vdwg.mxu0
    %454 = vmatpush.msra.mxu0 %v429
    %455 = vmatpush.msra.mxu0 %v425
    %456 = vmatpush.msra.mxu0 %v421
    %457 = vmatpush.msra.mxu0 %v417
    %458 = vmatpush.msra.mxu0 %v413
    %459 = vmatpush.msra.mxu0 %v409
    %460 = vmatpush.msra.mxu0 %v405
    %461 = vmatpush.msra.mxu0 %v401
    %462 = vmatpush.msra.mxu0 %v397
    %463 = vmatpush.msra.mxu0 %v393
    %464 = vmatpush.msra.mxu0 %v389
    %465 = vmatpush.msra.mxu0 %v385
    %466 = vmatpush.msra.mxu0 %v381
    %467 = vmatpush.msra.mxu0 %v377
    %468 = vmatpush.msra.mxu0 %v373
    %469 = vmatpush.msra.mxu0 %v369
    %470 = vmatmul.f32.gmra.mxu0 %v432
    %v471 = vpop.f32.mrf.mxu0
    %v472 = vadd.f32 0.0, %v471
    %473 = vdwg.mxu0
    %474 = vmatpush.msra.mxu0 %v430
    %475 = vmatpush.msra.mxu0 %v426
    %476 = vmatpush.msra.mxu0 %v422
    %477 = vmatpush.msra.mxu0 %v418
    %478 = vmatpush.msra.mxu0 %v414
    %479 = vmatpush.msra.mxu0 %v410
    %480 = vmatpush.msra.mxu0 %v406
    %481 = vmatpush.msra.mxu0 %v402
    %482 = vmatpush.msra.mxu0 %v398
    %483 = vmatpush.msra.mxu0 %v394
    %484 = vmatpush.msra.mxu0 %v390
    %485 = vmatpush.msra.mxu0 %v386
    %486 = vmatpush.msra.mxu0 %v382
    %487 = vmatpush.msra.mxu0 %v378
    %488 = vmatpush.msra.mxu0 %v374
    %489 = vmatpush.msra.mxu0 %v370
    %490 = vmatmul.f32.gmra.mxu0 %v432
    %v491 = vpop.f32.mrf.mxu0
    %v492 = vadd.f32 0.0, %v491
    %493 = vdwg.mxu0
    %494 = vmatpush.msra.mxu0 %v431
    %495 = vmatpush.msra.mxu0 %v427
    %496 = vmatpush.msra.mxu0 %v423
    %497 = vmatpush.msra.mxu0 %v419
    %498 = vmatpush.msra.mxu0 %v415
    %499 = vmatpush.msra.mxu0 %v411
    %500 = vmatpush.msra.mxu0 %v407
    %501 = vmatpush.msra.mxu0 %v403
    %502 = vmatpush.msra.mxu0 %v399
    %503 = vmatpush.msra.mxu0 %v395
    %504 = vmatpush.msra.mxu0 %v391
    %505 = vmatpush.msra.mxu0 %v387
    %506 = vmatpush.msra.mxu0 %v383
    %507 = vmatpush.msra.mxu0 %v379
    %508 = vmatpush.msra.mxu0 %v375
    %509 = vmatpush.msra.mxu0 %v371
    %510 = vmatmul.f32.gmra.mxu0 %v432
    %v511 = vpop.f32.mrf.mxu0
    %v512 = vadd.f32 0.0, %v511
    %513 = vdwg.mxu0
    %v514 = vadd.f32 %v222, %v452
    %v515 = vadd.f32 %v263, %v472
    %v516 = vadd.f32 %v304, %v492
    %v517 = vadd.f32 %v345, %v512
    %v518 = vxor.u32 %v514, 2147483648
    %v519 = vmul.f32 %v518, 1.442695
    %v520 = vpow.pop %v519
    %v521 = vadd.f32 %v520, 1.0
    %v522 = vrcp.pop %v521
    %v523 = vmul.f32 %v521, %v522
    %v524 = vsub.f32 1.0, %v523
    %v525 = vmul.f32 %v522, %v524
    %v526 = vadd.f32 %v522, %v525
    %vm527 = vweird.f32 %v521
    %vm528 = vweird.f32 %v522
    %vm529 = vmor %vm527, %vm528
    %v530 = vsel %vm529, %v522, %v526
    %v531 = vand.u32 2147483647, %v521
    %vm532 = vcmp.eq.f32.partialorder %v531, 8.507059e+37
    %v533 = vand.u32 %v521, 2147483648
    %v534 = vor.u32 1.1754944e-38, %v533
    %v535 = vsel %vm532, %v534, %v530
    %v536 = vmul.f32 1.0, %v535
    %v537 = vxor.u32 %v515, 2147483648
    %v538 = vmul.f32 %v537, 1.442695
    %v539 = vpow.pop %v538
    %v540 = vadd.f32 %v539, 1.0
    %v541 = vrcp.pop %v540
    %v542 = vmul.f32 %v540, %v541
    %v543 = vsub.f32 1.0, %v542
    %v544 = vmul.f32 %v541, %v543
    %v545 = vadd.f32 %v541, %v544
    %vm546 = vweird.f32 %v540
    %vm547 = vweird.f32 %v541
    %vm548 = vmor %vm546, %vm547
    %v549 = vsel %vm548, %v541, %v545
    %v550 = vand.u32 2147483647, %v540
    %vm551 = vcmp.eq.f32.partialorder %v550, 8.507059e+37
    %v552 = vand.u32 %v540, 2147483648
    %v553 = vor.u32 1.1754944e-38, %v552
    %v554 = vsel %vm551, %v553, %v549
    %v555 = vmul.f32 1.0, %v554
    %v556 = vtanh.pop %v516
    %v557 = vxor.u32 %v517, 2147483648
    %v558 = vmul.f32 %v557, 1.442695
    %v559 = vpow.pop %v558
    %v560 = vadd.f32 %v559, 1.0
    %v561 = vrcp.pop %v560
    %v562 = vmul.f32 %v560, %v561
    %v563 = vsub.f32 1.0, %v562
    %v564 = vmul.f32 %v561, %v563
    %v565 = vadd.f32 %v561, %v564
    %vm566 = vweird.f32 %v560
    %vm567 = vweird.f32 %v561
    %vm568 = vmor %vm566, %vm567
    %v569 = vsel %vm568, %v561, %v565
    %v570 = vand.u32 2147483647, %v560
    %vm571 = vcmp.eq.f32.partialorder %v570, 8.507059e+37
    %v572 = vand.u32 %v560, 2147483648
    %v573 = vor.u32 1.1754944e-38, %v572
    %v574 = vsel %vm571, %v573, %v569
    %v575 = vmul.f32 1.0, %v574
    %v576 = vmul.f32 %v555, %v433
    %v577 = vmul.f32 %v536, %v556
    %v578 = vadd.f32 %v576, %v577
    %v579 = vtanh.pop %v578
    %v580 = vmul.f32 %v575, %v579
    %581 = vmatpush.msra.mxu0 %v428
    %582 = vmatpush.msra.mxu0 %v424
    %583 = vmatpush.msra.mxu0 %v420
    %584 = vmatpush.msra.mxu0 %v416
    %585 = vmatpush.msra.mxu0 %v412
    %586 = vmatpush.msra.mxu0 %v408
    %587 = vmatpush.msra.mxu0 %v404
    %588 = vmatpush.msra.mxu0 %v400
    %589 = vmatpush.msra.mxu0 %v396
    %590 = vmatpush.msra.mxu0 %v392
    %591 = vmatpush.msra.mxu0 %v388
    %592 = vmatpush.msra.mxu0 %v384
    %593 = vmatpush.msra.mxu0 %v380
    %594 = vmatpush.msra.mxu0 %v376
    %595 = vmatpush.msra.mxu0 %v372
    %596 = vmatpush.msra.mxu0 %v368
    %597 = vmatmul.f32.gmra.mxu0 %v580
    %v598 = vpop.f32.mrf.mxu0
    %v599 = vadd.f32 0.0, %v598
    %600 = vdwg.mxu0
    %601 = vmatpush.msra.mxu0 %v429
    %602 = vmatpush.msra.mxu0 %v425
    %603 = vmatpush.msra.mxu0 %v421
    %604 = vmatpush.msra.mxu0 %v417
    %605 = vmatpush.msra.mxu0 %v413
    %606 = vmatpush.msra.mxu0 %v409
    %607 = vmatpush.msra.mxu0 %v405
    %608 = vmatpush.msra.mxu0 %v401
    %609 = vmatpush.msra.mxu0 %v397
    %610 = vmatpush.msra.mxu0 %v393
    %611 = vmatpush.msra.mxu0 %v389
    %612 = vmatpush.msra.mxu0 %v385
    %613 = vmatpush.msra.mxu0 %v381
    %614 = vmatpush.msra.mxu0 %v377
    %615 = vmatpush.msra.mxu0 %v373
    %616 = vmatpush.msra.mxu0 %v369
    %617 = vmatmul.f32.gmra.mxu0 %v580
    %v618 = vpop.f32.mrf.mxu0
    %v619 = vadd.f32 0.0, %v618
    %620 = vdwg.mxu0
    %621 = vmatpush.msra.mxu0 %v430
    %622 = vmatpush.msra.mxu0 %v426
    %623 = vmatpush.msra.mxu0 %v422
    %624 = vmatpush.msra.mxu0 %v418
    %625 = vmatpush.msra.mxu0 %v414
    %626 = vmatpush.msra.mxu0 %v410
    %627 = vmatpush.msra.mxu0 %v406
    %628 = vmatpush.msra.mxu0 %v402
    %629 = vmatpush.msra.mxu0 %v398
    %630 = vmatpush.msra.mxu0 %v394
    %631 = vmatpush.msra.mxu0 %v390
    %632 = vmatpush.msra.mxu0 %v386
    %633 = vmatpush.msra.mxu0 %v382
    %634 = vmatpush.msra.mxu0 %v378
    %635 = vmatpush.msra.mxu0 %v374
    %636 = vmatpush.msra.mxu0 %v370
    %637 = vmatmul.f32.gmra.mxu0 %v580
    %v638 = vpop.f32.mrf.mxu0
    %v639 = vadd.f32 0.0, %v638
    %640 = vdwg.mxu0
    %641 = vmatpush.msra.mxu0 %v431
    %642 = vmatpush.msra.mxu0 %v427
    %643 = vmatpush.msra.mxu0 %v423
    %644 = vmatpush.msra.mxu0 %v419
    %645 = vmatpush.msra.mxu0 %v415
    %646 = vmatpush.msra.mxu0 %v411
    %647 = vmatpush.msra.mxu0 %v407
    %648 = vmatpush.msra.mxu0 %v403
    %649 = vmatpush.msra.mxu0 %v399
    %650 = vmatpush.msra.mxu0 %v395
    %651 = vmatpush.msra.mxu0 %v391
    %652 = vmatpush.msra.mxu0 %v387
    %653 = vmatpush.msra.mxu0 %v383
    %654 = vmatpush.msra.mxu0 %v379
    %655 = vmatpush.msra.mxu0 %v375
    %656 = vmatpush.msra.mxu0 %v371
    %657 = vmatmul.f32.gmra.mxu0 %v580
    %v658 = vpop.f32.mrf.mxu0
    %v659 = vadd.f32 0.0, %v658
    %660 = vdwg.mxu0
    %v661 = vadd.f32 %v225, %v599
    %v662 = vadd.f32 %v266, %v619
    %v663 = vadd.f32 %v307, %v639
    %v664 = vadd.f32 %v348, %v659
    %v665 = vxor.u32 %v661, 2147483648
    %v666 = vmul.f32 %v665, 1.442695
    %v667 = vpow.pop %v666
    %v668 = vadd.f32 %v667, 1.0
    %v669 = vrcp.pop %v668
    %v670 = vmul.f32 %v668, %v669
    %v671 = vsub.f32 1.0, %v670
    %v672 = vmul.f32 %v669, %v671
    %v673 = vadd.f32 %v669, %v672
    %vm674 = vweird.f32 %v668
    %vm675 = vweird.f32 %v669
    %vm676 = vmor %vm674, %vm675
    %v677 = vsel %vm676, %v669, %v673
    %v678 = vand.u32 2147483647, %v668
    %vm679 = vcmp.eq.f32.partialorder %v678, 8.507059e+37
    %v680 = vand.u32 %v668, 2147483648
    %v681 = vor.u32 1.1754944e-38, %v680
    %v682 = vsel %vm679, %v681, %v677
    %v683 = vmul.f32 1.0, %v682
    %v684 = vxor.u32 %v662, 2147483648
    %v685 = vmul.f32 %v684, 1.442695
    %v686 = vpow.pop %v685
    %v687 = vadd.f32 %v686, 1.0
    %v688 = vrcp.pop %v687
    %v689 = vmul.f32 %v687, %v688
    %v690 = vsub.f32 1.0, %v689
    %v691 = vmul.f32 %v688, %v690
    %v692 = vadd.f32 %v688, %v691
    %vm693 = vweird.f32 %v687
    %vm694 = vweird.f32 %v688
    %vm695 = vmor %vm693, %vm694
    %v696 = vsel %vm695, %v688, %v692
    %v697 = vand.u32 2147483647, %v687
    %vm698 = vcmp.eq.f32.partialorder %v697, 8.507059e+37
    %v699 = vand.u32 %v687, 2147483648
    %v700 = vor.u32 1.1754944e-38, %v699
    %v701 = vsel %vm698, %v700, %v696
    %v702 = vmul.f32 1.0, %v701
    %v703 = vtanh.pop %v663
    %v704 = vxor.u32 %v664, 2147483648
    %v705 = vmul.f32 %v704, 1.442695
    %v706 = vpow.pop %v705
    %v707 = vadd.f32 %v706, 1.0
    %v708 = vrcp.pop %v707
    %v709 = vmul.f32 %v707, %v708
    %v710 = vsub.f32 1.0, %v709
    %v711 = vmul.f32 %v708, %v710
    %v712 = vadd.f32 %v708, %v711
    %vm713 = vweird.f32 %v707
    %vm714 = vweird.f32 %v708
    %vm715 = vmor %vm713, %vm714
    %v716 = vsel %vm715, %v708, %v712
    %v717 = vand.u32 2147483647, %v707
    %vm718 = vcmp.eq.f32.partialorder %v717, 8.507059e+37
    %v719 = vand.u32 %v707, 2147483648
    %v720 = vor.u32 1.1754944e-38, %v719
    %v721 = vsel %vm718, %v720, %v716
    %v722 = vmul.f32 1.0, %v721
    %v723 = vmul.f32 %v702, %v578
    %v724 = vmul.f32 %v683, %v703
    %v725 = vadd.f32 %v723, %v724
    %v726 = vtanh.pop %v725
    %v727 = vmul.f32 %v722, %v726
    %728 = vmatpush.msra.mxu0 %v428
    %729 = vmatpush.msra.mxu0 %v424
    %730 = vmatpush.msra.mxu0 %v420
    %731 = vmatpush.msra.mxu0 %v416
    %732 = vmatpush.msra.mxu0 %v412
    %733 = vmatpush.msra.mxu0 %v408
    %734 = vmatpush.msra.mxu0 %v404
    %735 = vmatpush.msra.mxu0 %v400
    %736 = vmatpush.msra.mxu0 %v396
    %737 = vmatpush.msra.mxu0 %v392
    %738 = vmatpush.msra.mxu0 %v388
    %739 = vmatpush.msra.mxu0 %v384
    %740 = vmatpush.msra.mxu0 %v380
    %741 = vmatpush.msra.mxu0 %v376
    %742 = vmatpush.msra.mxu0 %v372
    %743 = vmatpush.msra.mxu0 %v368
    %744 = vmatmul.f32.gmra.mxu0 %v727
    %v745 = vpop.f32.mrf.mxu0
    %v746 = vadd.f32 0.0, %v745
    %747 = vdwg.mxu0
    %748 = vmatpush.msra.mxu0 %v429
    %749 = vmatpush.msra.mxu0 %v425
    %750 = vmatpush.msra.mxu0 %v421
    %751 = vmatpush.msra.mxu0 %v417
    %752 = vmatpush.msra.mxu0 %v413
    %753 = vmatpush.msra.mxu0 %v409
    %754 = vmatpush.msra.mxu0 %v405
    %755 = vmatpush.msra.mxu0 %v401
    %756 = vmatpush.msra.mxu0 %v397
    %757 = vmatpush.msra.mxu0 %v393
    %758 = vmatpush.msra.mxu0 %v389
    %759 = vmatpush.msra.mxu0 %v385
    %760 = vmatpush.msra.mxu0 %v381
    %761 = vmatpush.msra.mxu0 %v377
    %762 = vmatpush.msra.mxu0 %v373
    %763 = vmatpush.msra.mxu0 %v369
    %764 = vmatmul.f32.gmra.mxu0 %v727
    %v765 = vpop.f32.mrf.mxu0
    %v766 = vadd.f32 0.0, %v765
    %767 = vdwg.mxu0
    %768 = vmatpush.msra.mxu0 %v430
    %769 = vmatpush.msra.mxu0 %v426
    %770 = vmatpush.msra.mxu0 %v422
    %771 = vmatpush.msra.mxu0 %v418
    %772 = vmatpush.msra.mxu0 %v414
    %773 = vmatpush.msra.mxu0 %v410
    %774 = vmatpush.msra.mxu0 %v406
    %775 = vmatpush.msra.mxu0 %v402
    %776 = vmatpush.msra.mxu0 %v398
    %777 = vmatpush.msra.mxu0 %v394
    %778 = vmatpush.msra.mxu0 %v390
    %779 = vmatpush.msra.mxu0 %v386
    %780 = vmatpush.msra.mxu0 %v382
    %781 = vmatpush.msra.mxu0 %v378
    %782 = vmatpush.msra.mxu0 %v374
    %783 = vmatpush.msra.mxu0 %v370
    %784 = vmatmul.f32.gmra.mxu0 %v727
    %v785 = vpop.f32.mrf.mxu0
    %v786 = vadd.f32 0.0, %v785
    %787 = vdwg.mxu0
    %788 = vmatpush.msra.mxu0 %v431
    %789 = vmatpush.msra.mxu0 %v427
    %790 = vmatpush.msra.mxu0 %v423
    %791 = vmatpush.msra.mxu0 %v419
    %792 = vmatpush.msra.mxu0 %v415
    %793 = vmatpush.msra.mxu0 %v411
    %794 = vmatpush.msra.mxu0 %v407
    %795 = vmatpush.msra.mxu0 %v403
    %796 = vmatpush.msra.mxu0 %v399
    %797 = vmatpush.msra.mxu0 %v395
    %798 = vmatpush.msra.mxu0 %v391
    %799 = vmatpush.msra.mxu0 %v387
    %800 = vmatpush.msra.mxu0 %v383
    %801 = vmatpush.msra.mxu0 %v379
    %802 = vmatpush.msra.mxu0 %v375
    %803 = vmatpush.msra.mxu0 %v371
    %804 = vmatmul.f32.gmra.mxu0 %v727
    %v805 = vpop.f32.mrf.mxu0
    %v806 = vadd.f32 0.0, %v805
    %807 = vdwg.mxu0
    %v808 = vadd.f32 %v228, %v746
    %v809 = vadd.f32 %v269, %v766
    %v810 = vadd.f32 %v310, %v786
    %v811 = vadd.f32 %v351, %v806
    %v812 = vxor.u32 %v808, 2147483648
    %v813 = vmul.f32 %v812, 1.442695
    %v814 = vpow.pop %v813
    %v815 = vadd.f32 %v814, 1.0
    %v816 = vrcp.pop %v815
    %v817 = vmul.f32 %v815, %v816
    %v818 = vsub.f32 1.0, %v817
    %v819 = vmul.f32 %v816, %v818
    %v820 = vadd.f32 %v816, %v819
    %vm821 = vweird.f32 %v815
    %vm822 = vweird.f32 %v816
    %vm823 = vmor %vm821, %vm822
    %v824 = vsel %vm823, %v816, %v820
    %v825 = vand.u32 2147483647, %v815
    %vm826 = vcmp.eq.f32.partialorder %v825, 8.507059e+37
    %v827 = vand.u32 %v815, 2147483648
    %v828 = vor.u32 1.1754944e-38, %v827
    %v829 = vsel %vm826, %v828, %v824
    %v830 = vmul.f32 1.0, %v829
    %v831 = vxor.u32 %v809, 2147483648
    %v832 = vmul.f32 %v831, 1.442695
    %v833 = vpow.pop %v832
    %v834 = vadd.f32 %v833, 1.0
    %v835 = vrcp.pop %v834
    %v836 = vmul.f32 %v834, %v835
    %v837 = vsub.f32 1.0, %v836
    %v838 = vmul.f32 %v835, %v837
    %v839 = vadd.f32 %v835, %v838
    %vm840 = vweird.f32 %v834
    %vm841 = vweird.f32 %v835
    %vm842 = vmor %vm840, %vm841
    %v843 = vsel %vm842, %v835, %v839
    %v844 = vand.u32 2147483647, %v834
    %vm845 = vcmp.eq.f32.partialorder %v844, 8.507059e+37
    %v846 = vand.u32 %v834, 2147483648
    %v847 = vor.u32 1.1754944e-38, %v846
    %v848 = vsel %vm845, %v847, %v843
    %v849 = vmul.f32 1.0, %v848
    %v850 = vtanh.pop %v810
    %v851 = vxor.u32 %v811, 2147483648
    %v852 = vmul.f32 %v851, 1.442695
    %v853 = vpow.pop %v852
    %v854 = vadd.f32 %v853, 1.0
    %v855 = vrcp.pop %v854
    %v856 = vmul.f32 %v854, %v855
    %v857 = vsub.f32 1.0, %v856
    %v858 = vmul.f32 %v855, %v857
    %v859 = vadd.f32 %v855, %v858
    %vm860 = vweird.f32 %v854
    %vm861 = vweird.f32 %v855
    %vm862 = vmor %vm860, %vm861
    %v863 = vsel %vm862, %v855, %v859
    %v864 = vand.u32 2147483647, %v854
    %vm865 = vcmp.eq.f32.partialorder %v864, 8.507059e+37
    %v866 = vand.u32 %v854, 2147483648
    %v867 = vor.u32 1.1754944e-38, %v866
    %v868 = vsel %vm865, %v867, %v863
    %v869 = vmul.f32 1.0, %v868
    %v870 = vmul.f32 %v849, %v725
    %v871 = vmul.f32 %v830, %v850
    %v872 = vadd.f32 %v870, %v871
    %v873 = vtanh.pop %v872
    %v874 = vmul.f32 %v869, %v873
    %875 = vmatpush.msra.mxu0 %v428
    %876 = vmatpush.msra.mxu0 %v424
    %877 = vmatpush.msra.mxu0 %v420
    %878 = vmatpush.msra.mxu0 %v416
    %879 = vmatpush.msra.mxu0 %v412
    %880 = vmatpush.msra.mxu0 %v408
    %881 = vmatpush.msra.mxu0 %v404
    %882 = vmatpush.msra.mxu0 %v400
    %883 = vmatpush.msra.mxu0 %v396
    %884 = vmatpush.msra.mxu0 %v392
    %885 = vmatpush.msra.mxu0 %v388
    %886 = vmatpush.msra.mxu0 %v384
    %887 = vmatpush.msra.mxu0 %v380
    %888 = vmatpush.msra.mxu0 %v376
    %889 = vmatpush.msra.mxu0 %v372
    %890 = vmatpush.msra.mxu0 %v368
    %891 = vmatmul.f32.gmra.mxu0 %v874
    %v892 = vpop.f32.mrf.mxu0
    %v893 = vadd.f32 0.0, %v892
    %894 = vdwg.mxu0
    %895 = vmatpush.msra.mxu0 %v429
    %896 = vmatpush.msra.mxu0 %v425
    %897 = vmatpush.msra.mxu0 %v421
    %898 = vmatpush.msra.mxu0 %v417
    %899 = vmatpush.msra.mxu0 %v413
    %900 = vmatpush.msra.mxu0 %v409
    %901 = vmatpush.msra.mxu0 %v405
    %902 = vmatpush.msra.mxu0 %v401
    %903 = vmatpush.msra.mxu0 %v397
    %904 = vmatpush.msra.mxu0 %v393
    %905 = vmatpush.msra.mxu0 %v389
    %906 = vmatpush.msra.mxu0 %v385
    %907 = vmatpush.msra.mxu0 %v381
    %908 = vmatpush.msra.mxu0 %v377
    %909 = vmatpush.msra.mxu0 %v373
    %910 = vmatpush.msra.mxu0 %v369
    %911 = vmatmul.f32.gmra.mxu0 %v874
    %v912 = vpop.f32.mrf.mxu0
    %v913 = vadd.f32 0.0, %v912
    %914 = vdwg.mxu0
    %915 = vmatpush.msra.mxu0 %v430
    %916 = vmatpush.msra.mxu0 %v426
    %917 = vmatpush.msra.mxu0 %v422
    %918 = vmatpush.msra.mxu0 %v418
    %919 = vmatpush.msra.mxu0 %v414
    %920 = vmatpush.msra.mxu0 %v410
    %921 = vmatpush.msra.mxu0 %v406
    %922 = vmatpush.msra.mxu0 %v402
    %923 = vmatpush.msra.mxu0 %v398
    %924 = vmatpush.msra.mxu0 %v394
    %925 = vmatpush.msra.mxu0 %v390
    %926 = vmatpush.msra.mxu0 %v386
    %927 = vmatpush.msra.mxu0 %v382
    %928 = vmatpush.msra.mxu0 %v378
    %929 = vmatpush.msra.mxu0 %v374
    %930 = vmatpush.msra.mxu0 %v370
    %931 = vmatmul.f32.gmra.mxu0 %v874
    %v932 = vpop.f32.mrf.mxu0
    %v933 = vadd.f32 0.0, %v932
    %934 = vdwg.mxu0
    %935 = vmatpush.msra.mxu0 %v431
    %936 = vmatpush.msra.mxu0 %v427
    %937 = vmatpush.msra.mxu0 %v423
    %938 = vmatpush.msra.mxu0 %v419
    %939 = vmatpush.msra.mxu0 %v415
    %940 = vmatpush.msra.mxu0 %v411
    %941 = vmatpush.msra.mxu0 %v407
    %942 = vmatpush.msra.mxu0 %v403
    %943 = vmatpush.msra.mxu0 %v399
    %944 = vmatpush.msra.mxu0 %v395
    %945 = vmatpush.msra.mxu0 %v391
    %946 = vmatpush.msra.mxu0 %v387
    %947 = vmatpush.msra.mxu0 %v383
    %948 = vmatpush.msra.mxu0 %v379
    %949 = vmatpush.msra.mxu0 %v375
    %950 = vmatpush.msra.mxu0 %v371
    %951 = vmatmul.f32.gmra.mxu0 %v874
    %v952 = vpop.f32.mrf.mxu0
    %v953 = vadd.f32 0.0, %v952
    %954 = vdwg.mxu0
    %v955 = vadd.f32 %v231, %v893
    %v956 = vadd.f32 %v272, %v913
    %v957 = vadd.f32 %v313, %v933
    %v958 = vadd.f32 %v354, %v953
    %v959 = vxor.u32 %v955, 2147483648
    %v960 = vmul.f32 %v959, 1.442695
    %v961 = vpow.pop %v960
    %v962 = vadd.f32 %v961, 1.0
    %v963 = vrcp.pop %v962
    %v964 = vmul.f32 %v962, %v963
    %v965 = vsub.f32 1.0, %v964
    %v966 = vmul.f32 %v963, %v965
    %v967 = vadd.f32 %v963, %v966
    %vm968 = vweird.f32 %v962
    %vm969 = vweird.f32 %v963
    %vm970 = vmor %vm968, %vm969
    %v971 = vsel %vm970, %v963, %v967
    %v972 = vand.u32 2147483647, %v962
    %vm973 = vcmp.eq.f32.partialorder %v972, 8.507059e+37
    %v974 = vand.u32 %v962, 2147483648
    %v975 = vor.u32 1.1754944e-38, %v974
    %v976 = vsel %vm973, %v975, %v971
    %v977 = vmul.f32 1.0, %v976
    %v978 = vxor.u32 %v956, 2147483648
    %v979 = vmul.f32 %v978, 1.442695
    %v980 = vpow.pop %v979
    %v981 = vadd.f32 %v980, 1.0
    %v982 = vrcp.pop %v981
    %v983 = vmul.f32 %v981, %v982
    %v984 = vsub.f32 1.0, %v983
    %v985 = vmul.f32 %v982, %v984
    %v986 = vadd.f32 %v982, %v985
    %vm987 = vweird.f32 %v981
    %vm988 = vweird.f32 %v982
    %vm989 = vmor %vm987, %vm988
    %v990 = vsel %vm989, %v982, %v986
    %v991 = vand.u32 2147483647, %v981
    %vm992 = vcmp.eq.f32.partialorder %v991, 8.507059e+37
    %v993 = vand.u32 %v981, 2147483648
    %v994 = vor.u32 1.1754944e-38, %v993
    %v995 = vsel %vm992, %v994, %v990
    %v996 = vmul.f32 1.0, %v995
    %v997 = vtanh.pop %v957
    %v998 = vxor.u32 %v958, 2147483648
    %v999 = vmul.f32 %v998, 1.442695
    %v1000 = vpow.pop %v999
    %v1001 = vadd.f32 %v1000, 1.0
    %v1002 = vrcp.pop %v1001
    %v1003 = vmul.f32 %v1001, %v1002
    %v1004 = vsub.f32 1.0, %v1003
    %v1005 = vmul.f32 %v1002, %v1004
    %v1006 = vadd.f32 %v1002, %v1005
    %vm1007 = vweird.f32 %v1001
    %vm1008 = vweird.f32 %v1002
    %vm1009 = vmor %vm1007, %vm1008
    %v1010 = vsel %vm1009, %v1002, %v1006
    %v1011 = vand.u32 2147483647, %v1001
    %vm1012 = vcmp.eq.f32.partialorder %v1011, 8.507059e+37
    %v1013 = vand.u32 %v1001, 2147483648
    %v1014 = vor.u32 1.1754944e-38, %v1013
    %v1015 = vsel %vm1012, %v1014, %v1010
    %v1016 = vmul.f32 1.0, %v1015
    %v1017 = vmul.f32 %v996, %v872
    %v1018 = vmul.f32 %v977, %v997
    %v1019 = vadd.f32 %v1017, %v1018
    %v1020 = vtanh.pop %v1019
    %v1021 = vmul.f32 %v1016, %v1020
    %1022 = vmatpush.msra.mxu0 %v428
    %1023 = vmatpush.msra.mxu0 %v424
    %1024 = vmatpush.msra.mxu0 %v420
    %1025 = vmatpush.msra.mxu0 %v416
    %1026 = vmatpush.msra.mxu0 %v412
    %1027 = vmatpush.msra.mxu0 %v408
    %1028 = vmatpush.msra.mxu0 %v404
    %1029 = vmatpush.msra.mxu0 %v400
    %1030 = vmatpush.msra.mxu0 %v396
    %1031 = vmatpush.msra.mxu0 %v392
    %1032 = vmatpush.msra.mxu0 %v388
    %1033 = vmatpush.msra.mxu0 %v384
    %1034 = vmatpush.msra.mxu0 %v380
    %1035 = vmatpush.msra.mxu0 %v376
    %1036 = vmatpush.msra.mxu0 %v372
    %1037 = vmatpush.msra.mxu0 %v368
    %1038 = vmatmul.f32.gmra.mxu0 %v1021
    %v1039 = vpop.f32.mrf.mxu0
    %v1040 = vadd.f32 0.0, %v1039
    %1041 = vdwg.mxu0
    %1042 = vmatpush.msra.mxu0 %v429
    %1043 = vmatpush.msra.mxu0 %v425
    %1044 = vmatpush.msra.mxu0 %v421
    %1045 = vmatpush.msra.mxu0 %v417
    %1046 = vmatpush.msra.mxu0 %v413
    %1047 = vmatpush.msra.mxu0 %v409
    %1048 = vmatpush.msra.mxu0 %v405
    %1049 = vmatpush.msra.mxu0 %v401
    %1050 = vmatpush.msra.mxu0 %v397
    %1051 = vmatpush.msra.mxu0 %v393
    %1052 = vmatpush.msra.mxu0 %v389
    %1053 = vmatpush.msra.mxu0 %v385
    %1054 = vmatpush.msra.mxu0 %v381
    %1055 = vmatpush.msra.mxu0 %v377
    %1056 = vmatpush.msra.mxu0 %v373
    %1057 = vmatpush.msra.mxu0 %v369
    %1058 = vmatmul.f32.gmra.mxu0 %v1021
    %v1059 = vpop.f32.mrf.mxu0
    %v1060 = vadd.f32 0.0, %v1059
    %1061 = vdwg.mxu0
    %1062 = vmatpush.msra.mxu0 %v430
    %1063 = vmatpush.msra.mxu0 %v426
    %1064 = vmatpush.msra.mxu0 %v422
    %1065 = vmatpush.msra.mxu0 %v418
    %1066 = vmatpush.msra.mxu0 %v414
    %1067 = vmatpush.msra.mxu0 %v410
    %1068 = vmatpush.msra.mxu0 %v406
    %1069 = vmatpush.msra.mxu0 %v402
    %1070 = vmatpush.msra.mxu0 %v398
    %1071 = vmatpush.msra.mxu0 %v394
    %1072 = vmatpush.msra.mxu0 %v390
    %1073 = vmatpush.msra.mxu0 %v386
    %1074 = vmatpush.msra.mxu0 %v382
    %1075 = vmatpush.msra.mxu0 %v378
    %1076 = vmatpush.msra.mxu0 %v374
    %1077 = vmatpush.msra.mxu0 %v370
    %1078 = vmatmul.f32.gmra.mxu0 %v1021
    %v1079 = vpop.f32.mrf.mxu0
    %v1080 = vadd.f32 0.0, %v1079
    %1081 = vdwg.mxu0
    %1082 = vmatpush.msra.mxu0 %v431
    %1083 = vmatpush.msra.mxu0 %v427
    %1084 = vmatpush.msra.mxu0 %v423
    %1085 = vmatpush.msra.mxu0 %v419
    %1086 = vmatpush.msra.mxu0 %v415
    %1087 = vmatpush.msra.mxu0 %v411
    %1088 = vmatpush.msra.mxu0 %v407
    %1089 = vmatpush.msra.mxu0 %v403
    %1090 = vmatpush.msra.mxu0 %v399
    %1091 = vmatpush.msra.mxu0 %v395
    %1092 = vmatpush.msra.mxu0 %v391
    %1093 = vmatpush.msra.mxu0 %v387
    %1094 = vmatpush.msra.mxu0 %v383
    %1095 = vmatpush.msra.mxu0 %v379
    %1096 = vmatpush.msra.mxu0 %v375
    %1097 = vmatpush.msra.mxu0 %v371
    %1098 = vmatmul.f32.gmra.mxu0 %v1021
    %v1099 = vpop.f32.mrf.mxu0
    %v1100 = vadd.f32 0.0, %v1099
    %1101 = vdwg.mxu0
    %v1102 = vadd.f32 %v234, %v1040
    %v1103 = vadd.f32 %v275, %v1060
    %v1104 = vadd.f32 %v316, %v1080
    %v1105 = vadd.f32 %v357, %v1100
    %v1106 = vxor.u32 %v1102, 2147483648
    %v1107 = vmul.f32 %v1106, 1.442695
    %v1108 = vpow.pop %v1107
    %v1109 = vadd.f32 %v1108, 1.0
    %v1110 = vrcp.pop %v1109
    %v1111 = vmul.f32 %v1109, %v1110
    %v1112 = vsub.f32 1.0, %v1111
    %v1113 = vmul.f32 %v1110, %v1112
    %v1114 = vadd.f32 %v1110, %v1113
    %vm1115 = vweird.f32 %v1109
    %vm1116 = vweird.f32 %v1110
    %vm1117 = vmor %vm1115, %vm1116
    %v1118 = vsel %vm1117, %v1110, %v1114
    %v1119 = vand.u32 2147483647, %v1109
    %vm1120 = vcmp.eq.f32.partialorder %v1119, 8.507059e+37
    %v1121 = vand.u32 %v1109, 2147483648
    %v1122 = vor.u32 1.1754944e-38, %v1121
    %v1123 = vsel %vm1120, %v1122, %v1118
    %v1124 = vmul.f32 1.0, %v1123
    %v1125 = vxor.u32 %v1103, 2147483648
    %v1126 = vmul.f32 %v1125, 1.442695
    %v1127 = vpow.pop %v1126
    %v1128 = vadd.f32 %v1127, 1.0
    %v1129 = vrcp.pop %v1128
    %v1130 = vmul.f32 %v1128, %v1129
    %v1131 = vsub.f32 1.0, %v1130
    %v1132 = vmul.f32 %v1129, %v1131
    %v1133 = vadd.f32 %v1129, %v1132
    %vm1134 = vweird.f32 %v1128
    %vm1135 = vweird.f32 %v1129
    %vm1136 = vmor %vm1134, %vm1135
    %v1137 = vsel %vm1136, %v1129, %v1133
    %v1138 = vand.u32 2147483647, %v1128
    %vm1139 = vcmp.eq.f32.partialorder %v1138, 8.507059e+37
    %v1140 = vand.u32 %v1128, 2147483648
    %v1141 = vor.u32 1.1754944e-38, %v1140
    %v1142 = vsel %vm1139, %v1141, %v1137
    %v1143 = vmul.f32 1.0, %v1142
    %v1144 = vtanh.pop %v1104
    %v1145 = vxor.u32 %v1105, 2147483648
    %v1146 = vmul.f32 %v1145, 1.442695
    %v1147 = vpow.pop %v1146
    %v1148 = vadd.f32 %v1147, 1.0
    %v1149 = vrcp.pop %v1148
    %v1150 = vmul.f32 %v1148, %v1149
    %v1151 = vsub.f32 1.0, %v1150
    %v1152 = vmul.f32 %v1149, %v1151
    %v1153 = vadd.f32 %v1149, %v1152
    %vm1154 = vweird.f32 %v1148
    %vm1155 = vweird.f32 %v1149
    %vm1156 = vmor %vm1154, %vm1155
    %v1157 = vsel %vm1156, %v1149, %v1153
    %v1158 = vand.u32 2147483647, %v1148
    %vm1159 = vcmp.eq.f32.partialorder %v1158, 8.507059e+37
    %v1160 = vand.u32 %v1148, 2147483648
    %v1161 = vor.u32 1.1754944e-38, %v1160
    %v1162 = vsel %vm1159, %v1161, %v1157
    %v1163 = vmul.f32 1.0, %v1162
    %v1164 = vmul.f32 %v1143, %v1019
    %v1165 = vmul.f32 %v1124, %v1144
    %v1166 = vadd.f32 %v1164, %v1165
    %v1167 = vtanh.pop %v1166
    %v1168 = vmul.f32 %v1163, %v1167
    %1169 = vmatpush.msra.mxu0 %v428
    %1170 = vmatpush.msra.mxu0 %v424
    %1171 = vmatpush.msra.mxu0 %v420
    %1172 = vmatpush.msra.mxu0 %v416
    %1173 = vmatpush.msra.mxu0 %v412
    %1174 = vmatpush.msra.mxu0 %v408
    %1175 = vmatpush.msra.mxu0 %v404
    %1176 = vmatpush.msra.mxu0 %v400
    %1177 = vmatpush.msra.mxu0 %v396
    %1178 = vmatpush.msra.mxu0 %v392
    %1179 = vmatpush.msra.mxu0 %v388
    %1180 = vmatpush.msra.mxu0 %v384
    %1181 = vmatpush.msra.mxu0 %v380
    %1182 = vmatpush.msra.mxu0 %v376
    %1183 = vmatpush.msra.mxu0 %v372
    %1184 = vmatpush.msra.mxu0 %v368
    %1185 = vmatmul.f32.gmra.mxu0 %v1168
    %v1186 = vpop.f32.mrf.mxu0
    %v1187 = vadd.f32 0.0, %v1186
    %1188 = vdwg.mxu0
    %1189 = vmatpush.msra.mxu0 %v429
    %1190 = vmatpush.msra.mxu0 %v425
    %1191 = vmatpush.msra.mxu0 %v421
    %1192 = vmatpush.msra.mxu0 %v417
    %1193 = vmatpush.msra.mxu0 %v413
    %1194 = vmatpush.msra.mxu0 %v409
    %1195 = vmatpush.msra.mxu0 %v405
    %1196 = vmatpush.msra.mxu0 %v401
    %1197 = vmatpush.msra.mxu0 %v397
    %1198 = vmatpush.msra.mxu0 %v393
    %1199 = vmatpush.msra.mxu0 %v389
    %1200 = vmatpush.msra.mxu0 %v385
    %1201 = vmatpush.msra.mxu0 %v381
    %1202 = vmatpush.msra.mxu0 %v377
    %1203 = vmatpush.msra.mxu0 %v373
    %1204 = vmatpush.msra.mxu0 %v369
    %1205 = vmatmul.f32.gmra.mxu0 %v1168
    %v1206 = vpop.f32.mrf.mxu0
    %v1207 = vadd.f32 0.0, %v1206
    %1208 = vdwg.mxu0
    %1209 = vmatpush.msra.mxu0 %v430
    %1210 = vmatpush.msra.mxu0 %v426
    %1211 = vmatpush.msra.mxu0 %v422
    %1212 = vmatpush.msra.mxu0 %v418
    %1213 = vmatpush.msra.mxu0 %v414
    %1214 = vmatpush.msra.mxu0 %v410
    %1215 = vmatpush.msra.mxu0 %v406
    %1216 = vmatpush.msra.mxu0 %v402
    %1217 = vmatpush.msra.mxu0 %v398
    %1218 = vmatpush.msra.mxu0 %v394
    %1219 = vmatpush.msra.mxu0 %v390
    %1220 = vmatpush.msra.mxu0 %v386
    %1221 = vmatpush.msra.mxu0 %v382
    %1222 = vmatpush.msra.mxu0 %v378
    %1223 = vmatpush.msra.mxu0 %v374
    %1224 = vmatpush.msra.mxu0 %v370
    %1225 = vmatmul.f32.gmra.mxu0 %v1168
    %v1226 = vpop.f32.mrf.mxu0
    %v1227 = vadd.f32 0.0, %v1226
    %1228 = vdwg.mxu0
    %1229 = vmatpush.msra.mxu0 %v431
    %1230 = vmatpush.msra.mxu0 %v427
    %1231 = vmatpush.msra.mxu0 %v423
    %1232 = vmatpush.msra.mxu0 %v419
    %1233 = vmatpush.msra.mxu0 %v415
    %1234 = vmatpush.msra.mxu0 %v411
    %1235 = vmatpush.msra.mxu0 %v407
    %1236 = vmatpush.msra.mxu0 %v403
    %1237 = vmatpush.msra.mxu0 %v399
    %1238 = vmatpush.msra.mxu0 %v395
    %1239 = vmatpush.msra.mxu0 %v391
    %1240 = vmatpush.msra.mxu0 %v387
    %1241 = vmatpush.msra.mxu0 %v383
    %1242 = vmatpush.msra.mxu0 %v379
    %1243 = vmatpush.msra.mxu0 %v375
    %1244 = vmatpush.msra.mxu0 %v371
    %1245 = vmatmul.f32.gmra.mxu0 %v1168
    %v1246 = vpop.f32.mrf.mxu0
    %v1247 = vadd.f32 0.0, %v1246
    %1248 = vdwg.mxu0
    %v1249 = vadd.f32 %v237, %v1187
    %v1250 = vadd.f32 %v278, %v1207
    %v1251 = vadd.f32 %v319, %v1227
    %v1252 = vadd.f32 %v360, %v1247
    %v1253 = vxor.u32 %v1249, 2147483648
    %v1254 = vmul.f32 %v1253, 1.442695
    %v1255 = vpow.pop %v1254
    %v1256 = vadd.f32 %v1255, 1.0
    %v1257 = vrcp.pop %v1256
    %v1258 = vmul.f32 %v1256, %v1257
    %v1259 = vsub.f32 1.0, %v1258
    %v1260 = vmul.f32 %v1257, %v1259
    %v1261 = vadd.f32 %v1257, %v1260
    %vm1262 = vweird.f32 %v1256
    %vm1263 = vweird.f32 %v1257
    %vm1264 = vmor %vm1262, %vm1263
    %v1265 = vsel %vm1264, %v1257, %v1261
    %v1266 = vand.u32 2147483647, %v1256
    %vm1267 = vcmp.eq.f32.partialorder %v1266, 8.507059e+37
    %v1268 = vand.u32 %v1256, 2147483648
    %v1269 = vor.u32 1.1754944e-38, %v1268
    %v1270 = vsel %vm1267, %v1269, %v1265
    %v1271 = vmul.f32 1.0, %v1270
    %v1272 = vxor.u32 %v1250, 2147483648
    %v1273 = vmul.f32 %v1272, 1.442695
    %v1274 = vpow.pop %v1273
    %v1275 = vadd.f32 %v1274, 1.0
    %v1276 = vrcp.pop %v1275
    %v1277 = vmul.f32 %v1275, %v1276
    %v1278 = vsub.f32 1.0, %v1277
    %v1279 = vmul.f32 %v1276, %v1278
    %v1280 = vadd.f32 %v1276, %v1279
    %vm1281 = vweird.f32 %v1275
    %vm1282 = vweird.f32 %v1276
    %vm1283 = vmor %vm1281, %vm1282
    %v1284 = vsel %vm1283, %v1276, %v1280
    %v1285 = vand.u32 2147483647, %v1275
    %vm1286 = vcmp.eq.f32.partialorder %v1285, 8.507059e+37
    %v1287 = vand.u32 %v1275, 2147483648
    %v1288 = vor.u32 1.1754944e-38, %v1287
    %v1289 = vsel %vm1286, %v1288, %v1284
    %v1290 = vmul.f32 1.0, %v1289
    %v1291 = vtanh.pop %v1251
    %v1292 = vxor.u32 %v1252, 2147483648
    %v1293 = vmul.f32 %v1292, 1.442695
    %v1294 = vpow.pop %v1293
    %v1295 = vadd.f32 %v1294, 1.0
    %v1296 = vrcp.pop %v1295
    %v1297 = vmul.f32 %v1295, %v1296
    %v1298 = vsub.f32 1.0, %v1297
    %v1299 = vmul.f32 %v1296, %v1298
    %v1300 = vadd.f32 %v1296, %v1299
    %vm1301 = vweird.f32 %v1295
    %vm1302 = vweird.f32 %v1296
    %vm1303 = vmor %vm1301, %vm1302
    %v1304 = vsel %vm1303, %v1296, %v1300
    %v1305 = vand.u32 2147483647, %v1295
    %vm1306 = vcmp.eq.f32.partialorder %v1305, 8.507059e+37
    %v1307 = vand.u32 %v1295, 2147483648
    %v1308 = vor.u32 1.1754944e-38, %v1307
    %v1309 = vsel %vm1306, %v1308, %v1304
    %v1310 = vmul.f32 1.0, %v1309
    %v1311 = vmul.f32 %v1290, %v1166
    %v1312 = vmul.f32 %v1271, %v1291
    %v1313 = vadd.f32 %v1311, %v1312
    %v1314 = vtanh.pop %v1313
    %v1315 = vmul.f32 %v1310, %v1314
    %1316 = vmatpush.msra.mxu0 %v428
    %1317 = vmatpush.msra.mxu0 %v424
    %1318 = vmatpush.msra.mxu0 %v420
    %1319 = vmatpush.msra.mxu0 %v416
    %1320 = vmatpush.msra.mxu0 %v412
    %1321 = vmatpush.msra.mxu0 %v408
    %1322 = vmatpush.msra.mxu0 %v404
    %1323 = vmatpush.msra.mxu0 %v400
    %1324 = vmatpush.msra.mxu0 %v396
    %1325 = vmatpush.msra.mxu0 %v392
    %1326 = vmatpush.msra.mxu0 %v388
    %1327 = vmatpush.msra.mxu0 %v384
    %1328 = vmatpush.msra.mxu0 %v380
    %1329 = vmatpush.msra.mxu0 %v376
    %1330 = vmatpush.msra.mxu0 %v372
    %1331 = vmatpush.msra.mxu0 %v368
    %1332 = vmatmul.f32.gmra.mxu0 %v1315
    %v1333 = vpop.f32.mrf.mxu0
    %v1334 = vadd.f32 0.0, %v1333
    %1335 = vdwg.mxu0
    %1336 = vmatpush.msra.mxu0 %v429
    %1337 = vmatpush.msra.mxu0 %v425
    %1338 = vmatpush.msra.mxu0 %v421
    %1339 = vmatpush.msra.mxu0 %v417
    %1340 = vmatpush.msra.mxu0 %v413
    %1341 = vmatpush.msra.mxu0 %v409
    %1342 = vmatpush.msra.mxu0 %v405
    %1343 = vmatpush.msra.mxu0 %v401
    %1344 = vmatpush.msra.mxu0 %v397
    %1345 = vmatpush.msra.mxu0 %v393
    %1346 = vmatpush.msra.mxu0 %v389
    %1347 = vmatpush.msra.mxu0 %v385
    %1348 = vmatpush.msra.mxu0 %v381
    %1349 = vmatpush.msra.mxu0 %v377
    %1350 = vmatpush.msra.mxu0 %v373
    %1351 = vmatpush.msra.mxu0 %v369
    %1352 = vmatmul.f32.gmra.mxu0 %v1315
    %v1353 = vpop.f32.mrf.mxu0
    %v1354 = vadd.f32 0.0, %v1353
    %1355 = vdwg.mxu0
    %1356 = vmatpush.msra.mxu0 %v430
    %1357 = vmatpush.msra.mxu0 %v426
    %1358 = vmatpush.msra.mxu0 %v422
    %1359 = vmatpush.msra.mxu0 %v418
    %1360 = vmatpush.msra.mxu0 %v414
    %1361 = vmatpush.msra.mxu0 %v410
    %1362 = vmatpush.msra.mxu0 %v406
    %1363 = vmatpush.msra.mxu0 %v402
    %1364 = vmatpush.msra.mxu0 %v398
    %1365 = vmatpush.msra.mxu0 %v394
    %1366 = vmatpush.msra.mxu0 %v390
    %1367 = vmatpush.msra.mxu0 %v386
    %1368 = vmatpush.msra.mxu0 %v382
    %1369 = vmatpush.msra.mxu0 %v378
    %1370 = vmatpush.msra.mxu0 %v374
    %1371 = vmatpush.msra.mxu0 %v370
    %1372 = vmatmul.f32.gmra.mxu0 %v1315
    %v1373 = vpop.f32.mrf.mxu0
    %v1374 = vadd.f32 0.0, %v1373
    %1375 = vdwg.mxu0
    %1376 = vmatpush.msra.mxu0 %v431
    %1377 = vmatpush.msra.mxu0 %v427
    %1378 = vmatpush.msra.mxu0 %v423
    %1379 = vmatpush.msra.mxu0 %v419
    %1380 = vmatpush.msra.mxu0 %v415
    %1381 = vmatpush.msra.mxu0 %v411
    %1382 = vmatpush.msra.mxu0 %v407
    %1383 = vmatpush.msra.mxu0 %v403
    %1384 = vmatpush.msra.mxu0 %v399
    %1385 = vmatpush.msra.mxu0 %v395
    %1386 = vmatpush.msra.mxu0 %v391
    %1387 = vmatpush.msra.mxu0 %v387
    %1388 = vmatpush.msra.mxu0 %v383
    %1389 = vmatpush.msra.mxu0 %v379
    %1390 = vmatpush.msra.mxu0 %v375
    %1391 = vmatpush.msra.mxu0 %v371
    %1392 = vmatmul.f32.gmra.mxu0 %v1315
    %v1393 = vpop.f32.mrf.mxu0
    %v1394 = vadd.f32 0.0, %v1393
    %1395 = vdwg.mxu0
    %v1396 = vadd.f32 %v240, %v1334
    %v1397 = vadd.f32 %v281, %v1354
    %v1398 = vadd.f32 %v322, %v1374
    %v1399 = vadd.f32 %v363, %v1394
    %v1400 = vxor.u32 %v1396, 2147483648
    %v1401 = vmul.f32 %v1400, 1.442695
    %v1402 = vpow.pop %v1401
    %v1403 = vadd.f32 %v1402, 1.0
    %v1404 = vrcp.pop %v1403
    %v1405 = vmul.f32 %v1403, %v1404
    %v1406 = vsub.f32 1.0, %v1405
    %v1407 = vmul.f32 %v1404, %v1406
    %v1408 = vadd.f32 %v1404, %v1407
    %vm1409 = vweird.f32 %v1403
    %vm1410 = vweird.f32 %v1404
    %vm1411 = vmor %vm1409, %vm1410
    %v1412 = vsel %vm1411, %v1404, %v1408
    %v1413 = vand.u32 2147483647, %v1403
    %vm1414 = vcmp.eq.f32.partialorder %v1413, 8.507059e+37
    %v1415 = vand.u32 %v1403, 2147483648
    %v1416 = vor.u32 1.1754944e-38, %v1415
    %v1417 = vsel %vm1414, %v1416, %v1412
    %v1418 = vmul.f32 1.0, %v1417
    %v1419 = vxor.u32 %v1397, 2147483648
    %v1420 = vmul.f32 %v1419, 1.442695
    %v1421 = vpow.pop %v1420
    %v1422 = vadd.f32 %v1421, 1.0
    %v1423 = vrcp.pop %v1422
    %v1424 = vmul.f32 %v1422, %v1423
    %v1425 = vsub.f32 1.0, %v1424
    %v1426 = vmul.f32 %v1423, %v1425
    %v1427 = vadd.f32 %v1423, %v1426
    %vm1428 = vweird.f32 %v1422
    %vm1429 = vweird.f32 %v1423
    %vm1430 = vmor %vm1428, %vm1429
    %v1431 = vsel %vm1430, %v1423, %v1427
    %v1432 = vand.u32 2147483647, %v1422
    %vm1433 = vcmp.eq.f32.partialorder %v1432, 8.507059e+37
    %v1434 = vand.u32 %v1422, 2147483648
    %v1435 = vor.u32 1.1754944e-38, %v1434
    %v1436 = vsel %vm1433, %v1435, %v1431
    %v1437 = vmul.f32 1.0, %v1436
    %v1438 = vtanh.pop %v1398
    %v1439 = vxor.u32 %v1399, 2147483648
    %v1440 = vmul.f32 %v1439, 1.442695
    %v1441 = vpow.pop %v1440
    %v1442 = vadd.f32 %v1441, 1.0
    %v1443 = vrcp.pop %v1442
    %v1444 = vmul.f32 %v1442, %v1443
    %v1445 = vsub.f32 1.0, %v1444
    %v1446 = vmul.f32 %v1443, %v1445
    %v1447 = vadd.f32 %v1443, %v1446
    %vm1448 = vweird.f32 %v1442
    %vm1449 = vweird.f32 %v1443
    %vm1450 = vmor %vm1448, %vm1449
    %v1451 = vsel %vm1450, %v1443, %v1447
    %v1452 = vand.u32 2147483647, %v1442
    %vm1453 = vcmp.eq.f32.partialorder %v1452, 8.507059e+37
    %v1454 = vand.u32 %v1442, 2147483648
    %v1455 = vor.u32 1.1754944e-38, %v1454
    %v1456 = vsel %vm1453, %v1455, %v1451
    %v1457 = vmul.f32 1.0, %v1456
    %v1458 = vmul.f32 %v1437, %v1313
    %v1459 = vmul.f32 %v1418, %v1438
    %v1460 = vadd.f32 %v1458, %v1459
    %v1461 = vtanh.pop %v1460
    %v1462 = vmul.f32 %v1457, %v1461
    %1463 = vmatpush.msra.mxu0 %v428
    %1464 = vmatpush.msra.mxu0 %v424
    %1465 = vmatpush.msra.mxu0 %v420
    %1466 = vmatpush.msra.mxu0 %v416
    %1467 = vmatpush.msra.mxu0 %v412
    %1468 = vmatpush.msra.mxu0 %v408
    %1469 = vmatpush.msra.mxu0 %v404
    %1470 = vmatpush.msra.mxu0 %v400
    %1471 = vmatpush.msra.mxu0 %v396
    %1472 = vmatpush.msra.mxu0 %v392
    %1473 = vmatpush.msra.mxu0 %v388
    %1474 = vmatpush.msra.mxu0 %v384
    %1475 = vmatpush.msra.mxu0 %v380
    %1476 = vmatpush.msra.mxu0 %v376
    %1477 = vmatpush.msra.mxu0 %v372
    %1478 = vmatpush.msra.mxu0 %v368
    %1479 = vmatmul.f32.gmra.mxu0 %v1462
    %v1480 = vpop.f32.mrf.mxu0
    %v1481 = vadd.f32 0.0, %v1480
    %1482 = vdwg.mxu0
    %1483 = vmatpush.msra.mxu0 %v429
    %1484 = vmatpush.msra.mxu0 %v425
    %1485 = vmatpush.msra.mxu0 %v421
    %1486 = vmatpush.msra.mxu0 %v417
    %1487 = vmatpush.msra.mxu0 %v413
    %1488 = vmatpush.msra.mxu0 %v409
    %1489 = vmatpush.msra.mxu0 %v405
    %1490 = vmatpush.msra.mxu0 %v401
    %1491 = vmatpush.msra.mxu0 %v397
    %1492 = vmatpush.msra.mxu0 %v393
    %1493 = vmatpush.msra.mxu0 %v389
    %1494 = vmatpush.msra.mxu0 %v385
    %1495 = vmatpush.msra.mxu0 %v381
    %1496 = vmatpush.msra.mxu0 %v377
    %1497 = vmatpush.msra.mxu0 %v373
    %1498 = vmatpush.msra.mxu0 %v369
    %1499 = vmatmul.f32.gmra.mxu0 %v1462
    %v1500 = vpop.f32.mrf.mxu0
    %v1501 = vadd.f32 0.0, %v1500
    %1502 = vdwg.mxu0
    %1503 = vmatpush.msra.mxu0 %v430
    %1504 = vmatpush.msra.mxu0 %v426
    %1505 = vmatpush.msra.mxu0 %v422
    %1506 = vmatpush.msra.mxu0 %v418
    %1507 = vmatpush.msra.mxu0 %v414
    %1508 = vmatpush.msra.mxu0 %v410
    %1509 = vmatpush.msra.mxu0 %v406
    %1510 = vmatpush.msra.mxu0 %v402
    %1511 = vmatpush.msra.mxu0 %v398
    %1512 = vmatpush.msra.mxu0 %v394
    %1513 = vmatpush.msra.mxu0 %v390
    %1514 = vmatpush.msra.mxu0 %v386
    %1515 = vmatpush.msra.mxu0 %v382
    %1516 = vmatpush.msra.mxu0 %v378
    %1517 = vmatpush.msra.mxu0 %v374
    %1518 = vmatpush.msra.mxu0 %v370
    %1519 = vmatmul.f32.gmra.mxu0 %v1462
    %v1520 = vpop.f32.mrf.mxu0
    %v1521 = vadd.f32 0.0, %v1520
    %1522 = vdwg.mxu0
    %1523 = vmatpush.msra.mxu0 %v431
    %1524 = vmatpush.msra.mxu0 %v427
    %1525 = vmatpush.msra.mxu0 %v423
    %1526 = vmatpush.msra.mxu0 %v419
    %1527 = vmatpush.msra.mxu0 %v415
    %1528 = vmatpush.msra.mxu0 %v411
    %1529 = vmatpush.msra.mxu0 %v407
    %1530 = vmatpush.msra.mxu0 %v403
    %1531 = vmatpush.msra.mxu0 %v399
    %1532 = vmatpush.msra.mxu0 %v395
    %1533 = vmatpush.msra.mxu0 %v391
    %1534 = vmatpush.msra.mxu0 %v387
    %1535 = vmatpush.msra.mxu0 %v383
    %1536 = vmatpush.msra.mxu0 %v379
    %1537 = vmatpush.msra.mxu0 %v375
    %1538 = vmatpush.msra.mxu0 %v371
    %1539 = vmatmul.f32.gmra.mxu0 %v1462
    %v1540 = vpop.f32.mrf.mxu0
    %v1541 = vadd.f32 0.0, %v1540
    %1542 = vdwg.mxu0
    %v1543 = vadd.f32 %v243, %v1481
    %v1544 = vadd.f32 %v284, %v1501
    %v1545 = vadd.f32 %v325, %v1521
    %v1546 = vadd.f32 %v366, %v1541
    %v1547 = vxor.u32 %v1543, 2147483648
    %v1548 = vmul.f32 %v1547, 1.442695
    %v1549 = vpow.pop %v1548
    %v1550 = vadd.f32 %v1549, 1.0
    %v1551 = vrcp.pop %v1550
    %v1552 = vmul.f32 %v1550, %v1551
    %v1553 = vsub.f32 1.0, %v1552
    %v1554 = vmul.f32 %v1551, %v1553
    %v1555 = vadd.f32 %v1551, %v1554
    %vm1556 = vweird.f32 %v1550
    %vm1557 = vweird.f32 %v1551
    %vm1558 = vmor %vm1556, %vm1557
    %v1559 = vsel %vm1558, %v1551, %v1555
    %v1560 = vand.u32 2147483647, %v1550
    %vm1561 = vcmp.eq.f32.partialorder %v1560, 8.507059e+37
    %v1562 = vand.u32 %v1550, 2147483648
    %v1563 = vor.u32 1.1754944e-38, %v1562
    %v1564 = vsel %vm1561, %v1563, %v1559
    %v1565 = vmul.f32 1.0, %v1564
    %v1566 = vxor.u32 %v1544, 2147483648
    %v1567 = vmul.f32 %v1566, 1.442695
    %v1568 = vpow.pop %v1567
    %v1569 = vadd.f32 %v1568, 1.0
    %v1570 = vrcp.pop %v1569
    %v1571 = vmul.f32 %v1569, %v1570
    %v1572 = vsub.f32 1.0, %v1571
    %v1573 = vmul.f32 %v1570, %v1572
    %v1574 = vadd.f32 %v1570, %v1573
    %vm1575 = vweird.f32 %v1569
    %vm1576 = vweird.f32 %v1570
    %vm1577 = vmor %vm1575, %vm1576
    %v1578 = vsel %vm1577, %v1570, %v1574
    %v1579 = vand.u32 2147483647, %v1569
    %vm1580 = vcmp.eq.f32.partialorder %v1579, 8.507059e+37
    %v1581 = vand.u32 %v1569, 2147483648
    %v1582 = vor.u32 1.1754944e-38, %v1581
    %v1583 = vsel %vm1580, %v1582, %v1578
    %v1584 = vmul.f32 1.0, %v1583
    %v1585 = vtanh.pop %v1545
    %v1586 = vxor.u32 %v1546, 2147483648
    %v1587 = vmul.f32 %v1586, 1.442695
    %v1588 = vpow.pop %v1587
    %v1589 = vadd.f32 %v1588, 1.0
    %v1590 = vrcp.pop %v1589
    %v1591 = vmul.f32 %v1589, %v1590
    %v1592 = vsub.f32 1.0, %v1591
    %v1593 = vmul.f32 %v1590, %v1592
    %v1594 = vadd.f32 %v1590, %v1593
    %vm1595 = vweird.f32 %v1589
    %vm1596 = vweird.f32 %v1590
    %vm1597 = vmor %vm1595, %vm1596
    %v1598 = vsel %vm1597, %v1590, %v1594
    %v1599 = vand.u32 2147483647, %v1589
    %vm1600 = vcmp.eq.f32.partialorder %v1599, 8.507059e+37
    %v1601 = vand.u32 %v1589, 2147483648
    %v1602 = vor.u32 1.1754944e-38, %v1601
    %v1603 = vsel %vm1600, %v1602, %v1598
    %v1604 = vmul.f32 1.0, %v1603
    %v1605 = vmul.f32 %v1584, %v1460
    %v1606 = vmul.f32 %v1565, %v1585
    %v1607 = vadd.f32 %v1605, %v1606
    %v1608 = vtanh.pop %v1607
    %v1609 = vmul.f32 %v1604, %v1608
    %v1610 = vld [vmem:[#allocation8] sm:$0xff]
    %v1611 = vld [vmem:[#allocation8 + $0x8] sm:$0xff]
    %v1612 = vld [vmem:[#allocation8 + $0x10] sm:$0xff]
    %v1613 = vld [vmem:[#allocation8 + $0x18] sm:$0xff]
    %v1614 = vld [vmem:[#allocation8 + $0x20] sm:$0xff]
    %v1615 = vld [vmem:[#allocation8 + $0x28] sm:$0xff]
    %v1616 = vld [vmem:[#allocation8 + $0x30] sm:$0xff]
    %v1617 = vld [vmem:[#allocation8 + $0x38] sm:$0xff]
    %v1618 = vld [vmem:[#allocation2] sm:$0xff]
    %v1619 = vld [vmem:[#allocation10] sm:$0xff]
    %v1620 = vld [vmem:[#allocation10 + $0x8] sm:$0xff]
    %v1621 = vld [vmem:[#allocation10 + $0x10] sm:$0xff]
    %v1622 = vld [vmem:[#allocation10 + $0x18] sm:$0xff]
    %v1623 = vld [vmem:[#allocation10 + $0x20] sm:$0xff]
    %v1624 = vld [vmem:[#allocation10 + $0x28] sm:$0xff]
    %v1625 = vld [vmem:[#allocation10 + $0x30] sm:$0xff]
    %v1626 = vld [vmem:[#allocation10 + $0x38] sm:$0xff]
    %v1627 = vld [vmem:[#allocation10 + $0x40] sm:$0xff]
    %v1628 = vld [vmem:[#allocation10 + $0x48] sm:$0xff]
    %v1629 = vld [vmem:[#allocation10 + $0x50] sm:$0xff]
    %v1630 = vld [vmem:[#allocation10 + $0x58] sm:$0xff]
    %v1631 = vld [vmem:[#allocation10 + $0x60] sm:$0xff]
    %v1632 = vld [vmem:[#allocation10 + $0x68] sm:$0xff]
    %v1633 = vld [vmem:[#allocation10 + $0x70] sm:$0xff]
    %v1634 = vld [vmem:[#allocation10 + $0x78] sm:$0xff]
    %v1635 = vld [vmem:[#allocation10 + $0x80] sm:$0xff]
    %v1636 = vld [vmem:[#allocation10 + $0x88] sm:$0xff]
    %v1637 = vld [vmem:[#allocation10 + $0x90] sm:$0xff]
    %v1638 = vld [vmem:[#allocation10 + $0x98] sm:$0xff]
    %v1639 = vld [vmem:[#allocation10 + $0xa0] sm:$0xff]
    %v1640 = vld [vmem:[#allocation10 + $0xa8] sm:$0xff]
    %v1641 = vld [vmem:[#allocation10 + $0xb0] sm:$0xff]
    %v1642 = vld [vmem:[#allocation10 + $0xb8] sm:$0xff]
    %v1643 = vld [vmem:[#allocation10 + $0xc0] sm:$0xff]
    %v1644 = vld [vmem:[#allocation10 + $0xc8] sm:$0xff]
    %v1645 = vld [vmem:[#allocation10 + $0xd0] sm:$0xff]
    %v1646 = vld [vmem:[#allocation10 + $0xd8] sm:$0xff]
    %v1647 = vld [vmem:[#allocation10 + $0xe0] sm:$0xff]
    %v1648 = vld [vmem:[#allocation10 + $0xe8] sm:$0xff]
    %v1649 = vld [vmem:[#allocation10 + $0xf0] sm:$0xff]
    %v1650 = vld [vmem:[#allocation10 + $0xf8] sm:$0xff]
    %v1651 = vld [vmem:[#allocation10 + $0x100] sm:$0xff]
    %v1652 = vld [vmem:[#allocation10 + $0x108] sm:$0xff]
    %v1653 = vld [vmem:[#allocation10 + $0x110] sm:$0xff]
    %v1654 = vld [vmem:[#allocation10 + $0x118] sm:$0xff]
    %v1655 = vld [vmem:[#allocation10 + $0x120] sm:$0xff]
    %v1656 = vld [vmem:[#allocation10 + $0x128] sm:$0xff]
    %v1657 = vld [vmem:[#allocation10 + $0x130] sm:$0xff]
    %v1658 = vld [vmem:[#allocation10 + $0x138] sm:$0xff]
    %v1659 = vld [vmem:[#allocation10 + $0x140] sm:$0xff]
    %v1660 = vld [vmem:[#allocation10 + $0x148] sm:$0xff]
    %v1661 = vld [vmem:[#allocation10 + $0x150] sm:$0xff]
    %v1662 = vld [vmem:[#allocation10 + $0x158] sm:$0xff]
    %v1663 = vld [vmem:[#allocation10 + $0x160] sm:$0xff]
    %v1664 = vld [vmem:[#allocation10 + $0x168] sm:$0xff]
    %v1665 = vld [vmem:[#allocation10 + $0x170] sm:$0xff]
    %v1666 = vld [vmem:[#allocation10 + $0x178] sm:$0xff]
    %v1667 = vld [vmem:[#allocation10 + $0x180] sm:$0xff]
    %v1668 = vld [vmem:[#allocation10 + $0x188] sm:$0xff]
    %v1669 = vld [vmem:[#allocation10 + $0x190] sm:$0xff]
    %v1670 = vld [vmem:[#allocation10 + $0x198] sm:$0xff]
    %v1671 = vld [vmem:[#allocation10 + $0x1a0] sm:$0xff]
    %v1672 = vld [vmem:[#allocation10 + $0x1a8] sm:$0xff]
    %v1673 = vld [vmem:[#allocation10 + $0x1b0] sm:$0xff]
    %v1674 = vld [vmem:[#allocation10 + $0x1b8] sm:$0xff]
    %v1675 = vld [vmem:[#allocation10 + $0x1c0] sm:$0xff]
    %v1676 = vld [vmem:[#allocation10 + $0x1c8] sm:$0xff]
    %v1677 = vld [vmem:[#allocation10 + $0x1d0] sm:$0xff]
    %v1678 = vld [vmem:[#allocation10 + $0x1d8] sm:$0xff]
    %v1679 = vld [vmem:[#allocation10 + $0x1e0] sm:$0xff]
    %v1680 = vld [vmem:[#allocation10 + $0x1e8] sm:$0xff]
    %v1681 = vld [vmem:[#allocation10 + $0x1f0] sm:$0xff]
    %v1682 = vld [vmem:[#allocation10 + $0x1f8] sm:$0xff]
    %1683 = vmatpush.msra.mxu0 %v1679
    %1684 = vmatpush.msra.mxu0 %v1675
    %1685 = vmatpush.msra.mxu0 %v1671
    %1686 = vmatpush.msra.mxu0 %v1667
    %1687 = vmatpush.msra.mxu0 %v1663
    %1688 = vmatpush.msra.mxu0 %v1659
    %1689 = vmatpush.msra.mxu0 %v1655
    %1690 = vmatpush.msra.mxu0 %v1651
    %1691 = vmatpush.msra.mxu0 %v1647
    %1692 = vmatpush.msra.mxu0 %v1643
    %1693 = vmatpush.msra.mxu0 %v1639
    %1694 = vmatpush.msra.mxu0 %v1635
    %1695 = vmatpush.msra.mxu0 %v1631
    %1696 = vmatpush.msra.mxu0 %v1627
    %1697 = vmatpush.msra.mxu0 %v1623
    %1698 = vmatpush.msra.mxu0 %v1619
    %1699 = vmatmul.f32.gmra.mxu0 %v1618
    %v1700 = vpop.f32.mrf.mxu0
    %v1701 = vadd.f32 0.0, %v1700
    %1702 = vdwg.mxu0
    %1703 = vmatpush.msra.mxu0 %v1680
    %1704 = vmatpush.msra.mxu0 %v1676
    %1705 = vmatpush.msra.mxu0 %v1672
    %1706 = vmatpush.msra.mxu0 %v1668
    %1707 = vmatpush.msra.mxu0 %v1664
    %1708 = vmatpush.msra.mxu0 %v1660
    %1709 = vmatpush.msra.mxu0 %v1656
    %1710 = vmatpush.msra.mxu0 %v1652
    %1711 = vmatpush.msra.mxu0 %v1648
    %1712 = vmatpush.msra.mxu0 %v1644
    %1713 = vmatpush.msra.mxu0 %v1640
    %1714 = vmatpush.msra.mxu0 %v1636
    %1715 = vmatpush.msra.mxu0 %v1632
    %1716 = vmatpush.msra.mxu0 %v1628
    %1717 = vmatpush.msra.mxu0 %v1624
    %1718 = vmatpush.msra.mxu0 %v1620
    %1719 = vmatmul.f32.gmra.mxu0 %v1618
    %v1720 = vpop.f32.mrf.mxu0
    %v1721 = vadd.f32 0.0, %v1720
    %1722 = vdwg.mxu0
    %1723 = vmatpush.msra.mxu0 %v1681
    %1724 = vmatpush.msra.mxu0 %v1677
    %1725 = vmatpush.msra.mxu0 %v1673
    %1726 = vmatpush.msra.mxu0 %v1669
    %1727 = vmatpush.msra.mxu0 %v1665
    %1728 = vmatpush.msra.mxu0 %v1661
    %1729 = vmatpush.msra.mxu0 %v1657
    %1730 = vmatpush.msra.mxu0 %v1653
    %1731 = vmatpush.msra.mxu0 %v1649
    %1732 = vmatpush.msra.mxu0 %v1645
    %1733 = vmatpush.msra.mxu0 %v1641
    %1734 = vmatpush.msra.mxu0 %v1637
    %1735 = vmatpush.msra.mxu0 %v1633
    %1736 = vmatpush.msra.mxu0 %v1629
    %1737 = vmatpush.msra.mxu0 %v1625
    %1738 = vmatpush.msra.mxu0 %v1621
    %1739 = vmatmul.f32.gmra.mxu0 %v1618
    %v1740 = vpop.f32.mrf.mxu0
    %v1741 = vadd.f32 0.0, %v1740
    %1742 = vdwg.mxu0
    %1743 = vmatpush.msra.mxu0 %v1682
    %1744 = vmatpush.msra.mxu0 %v1678
    %1745 = vmatpush.msra.mxu0 %v1674
    %1746 = vmatpush.msra.mxu0 %v1670
    %1747 = vmatpush.msra.mxu0 %v1666
    %1748 = vmatpush.msra.mxu0 %v1662
    %1749 = vmatpush.msra.mxu0 %v1658
    %1750 = vmatpush.msra.mxu0 %v1654
    %1751 = vmatpush.msra.mxu0 %v1650
    %1752 = vmatpush.msra.mxu0 %v1646
    %1753 = vmatpush.msra.mxu0 %v1642
    %1754 = vmatpush.msra.mxu0 %v1638
    %1755 = vmatpush.msra.mxu0 %v1634
    %1756 = vmatpush.msra.mxu0 %v1630
    %1757 = vmatpush.msra.mxu0 %v1626
    %1758 = vmatpush.msra.mxu0 %v1622
    %1759 = vmatmul.f32.gmra.mxu0 %v1618
    %v1760 = vpop.f32.mrf.mxu0
    %v1761 = vadd.f32 0.0, %v1760
    %1762 = vdwg.mxu0
    %1763 = vmatpush.msra.mxu0 0.0
    %1764 = vmatpush.msra.mxu0 0.0
    %1765 = vmatpush.msra.mxu0 0.0
    %1766 = vmatpush.msra.mxu0 0.0
    %1767 = vmatpush.msra.mxu0 0.0
    %1768 = vmatpush.msra.mxu0 0.0
    %1769 = vmatpush.msra.mxu0 0.0
    %1770 = vmatpush.msra.mxu0 0.0
    %1771 = vmatpush.msra.mxu0 0.0
    %1772 = vmatpush.msra.mxu0 0.0
    %1773 = vmatpush.msra.mxu0 0.0
    %1774 = vmatpush.msra.mxu0 0.0
    %1775 = vmatpush.msra.mxu0 0.0
    %1776 = vmatpush.msra.mxu0 0.0
    %1777 = vmatpush.msra.mxu0 %v1614
    %1778 = vmatpush.msra.mxu0 %v1610
    %1779 = vmatmul.f32.gmra.mxu0 %v202
    %v1780 = vpop.f32.mrf.mxu0
    %v1781 = vadd.f32 %v1701, %v1780
    %1782 = vdwg.mxu0
    %1783 = vmatpush.msra.mxu0 0.0
    %1784 = vmatpush.msra.mxu0 0.0
    %1785 = vmatpush.msra.mxu0 0.0
    %1786 = vmatpush.msra.mxu0 0.0
    %1787 = vmatpush.msra.mxu0 0.0
    %1788 = vmatpush.msra.mxu0 0.0
    %1789 = vmatpush.msra.mxu0 0.0
    %1790 = vmatpush.msra.mxu0 0.0
    %1791 = vmatpush.msra.mxu0 0.0
    %1792 = vmatpush.msra.mxu0 0.0
    %1793 = vmatpush.msra.mxu0 0.0
    %1794 = vmatpush.msra.mxu0 0.0
    %1795 = vmatpush.msra.mxu0 0.0
    %1796 = vmatpush.msra.mxu0 0.0
    %1797 = vmatpush.msra.mxu0 %v1615
    %1798 = vmatpush.msra.mxu0 %v1611
    %1799 = vmatmul.f32.gmra.mxu0 %v202
    %v1800 = vpop.f32.mrf.mxu0
    %v1801 = vadd.f32 %v1721, %v1800
    %1802 = vdwg.mxu0
    %1803 = vmatpush.msra.mxu0 0.0
    %1804 = vmatpush.msra.mxu0 0.0
    %1805 = vmatpush.msra.mxu0 0.0
    %1806 = vmatpush.msra.mxu0 0.0
    %1807 = vmatpush.msra.mxu0 0.0
    %1808 = vmatpush.msra.mxu0 0.0
    %1809 = vmatpush.msra.mxu0 0.0
    %1810 = vmatpush.msra.mxu0 0.0
    %1811 = vmatpush.msra.mxu0 0.0
    %1812 = vmatpush.msra.mxu0 0.0
    %1813 = vmatpush.msra.mxu0 0.0
    %1814 = vmatpush.msra.mxu0 0.0
    %1815 = vmatpush.msra.mxu0 0.0
    %1816 = vmatpush.msra.mxu0 0.0
    %1817 = vmatpush.msra.mxu0 %v1616
    %1818 = vmatpush.msra.mxu0 %v1612
    %1819 = vmatmul.f32.gmra.mxu0 %v202
    %v1820 = vpop.f32.mrf.mxu0
    %v1821 = vadd.f32 %v1741, %v1820
    %1822 = vdwg.mxu0
    %1823 = vmatpush.msra.mxu0 0.0
    %1824 = vmatpush.msra.mxu0 0.0
    %1825 = vmatpush.msra.mxu0 0.0
    %1826 = vmatpush.msra.mxu0 0.0
    %1827 = vmatpush.msra.mxu0 0.0
    %1828 = vmatpush.msra.mxu0 0.0
    %1829 = vmatpush.msra.mxu0 0.0
    %1830 = vmatpush.msra.mxu0 0.0
    %1831 = vmatpush.msra.mxu0 0.0
    %1832 = vmatpush.msra.mxu0 0.0
    %1833 = vmatpush.msra.mxu0 0.0
    %1834 = vmatpush.msra.mxu0 0.0
    %1835 = vmatpush.msra.mxu0 0.0
    %1836 = vmatpush.msra.mxu0 0.0
    %1837 = vmatpush.msra.mxu0 %v1617
    %1838 = vmatpush.msra.mxu0 %v1613
    %1839 = vmatmul.f32.gmra.mxu0 %v202
    %v1840 = vpop.f32.mrf.mxu0
    %v1841 = vadd.f32 %v1761, %v1840
    %1842 = vdwg.mxu0
    %v1843 = vld [vmem:[%s10] sm:$0xf]
    %v1845 = vperm.slane %v1843, 0
    %v1846 = vperm.slane %v1843, 1
    %v1847 = vperm.slane %v1843, 2
    %v1848 = vperm.slane %v1843, 3
    %v1853 = vadd.f32 %v1781, %v1845
    %v1854 = vadd.f32 %v1801, %v1846
    %v1855 = vadd.f32 %v1821, %v1847
    %v1856 = vadd.f32 %v1841, %v1848
    %v1857 = vld [vmem:[#allocation5] sm:$0xff]
    %v1858 = vxor.u32 %v1853, 2147483648
    %v1859 = vmul.f32 %v1858, 1.442695
    %v1860 = vpow.pop %v1859
    %v1861 = vadd.f32 %v1860, 1.0
    %v1862 = vrcp.pop %v1861
    %v1863 = vmul.f32 %v1861, %v1862
    %v1864 = vsub.f32 1.0, %v1863
    %v1865 = vmul.f32 %v1862, %v1864
    %v1866 = vadd.f32 %v1862, %v1865
    %vm1867 = vweird.f32 %v1861
    %vm1868 = vweird.f32 %v1862
    %vm1869 = vmor %vm1867, %vm1868
    %v1870 = vsel %vm1869, %v1862, %v1866
    %v1871 = vand.u32 2147483647, %v1861
    %vm1872 = vcmp.eq.f32.partialorder %v1871, 8.507059e+37
    %v1873 = vand.u32 %v1861, 2147483648
    %v1874 = vor.u32 1.1754944e-38, %v1873
    %v1875 = vsel %vm1872, %v1874, %v1870
    %v1876 = vmul.f32 1.0, %v1875
    %v1877 = vxor.u32 %v1854, 2147483648
    %v1878 = vmul.f32 %v1877, 1.442695
    %v1879 = vpow.pop %v1878
    %v1880 = vadd.f32 %v1879, 1.0
    %v1881 = vrcp.pop %v1880
    %v1882 = vmul.f32 %v1880, %v1881
    %v1883 = vsub.f32 1.0, %v1882
    %v1884 = vmul.f32 %v1881, %v1883
    %v1885 = vadd.f32 %v1881, %v1884
    %vm1886 = vweird.f32 %v1880
    %vm1887 = vweird.f32 %v1881
    %vm1888 = vmor %vm1886, %vm1887
    %v1889 = vsel %vm1888, %v1881, %v1885
    %v1890 = vand.u32 2147483647, %v1880
    %vm1891 = vcmp.eq.f32.partialorder %v1890, 8.507059e+37
    %v1892 = vand.u32 %v1880, 2147483648
    %v1893 = vor.u32 1.1754944e-38, %v1892
    %v1894 = vsel %vm1891, %v1893, %v1889
    %v1895 = vmul.f32 1.0, %v1894
    %v1896 = vtanh.pop %v1855
    %v1897 = vxor.u32 %v1856, 2147483648
    %v1898 = vmul.f32 %v1897, 1.442695
    %v1899 = vpow.pop %v1898
    %v1900 = vadd.f32 %v1899, 1.0
    %v1901 = vrcp.pop %v1900
    %v1902 = vmul.f32 %v1900, %v1901
    %v1903 = vsub.f32 1.0, %v1902
    %v1904 = vmul.f32 %v1901, %v1903
    %v1905 = vadd.f32 %v1901, %v1904
    %vm1906 = vweird.f32 %v1900
    %vm1907 = vweird.f32 %v1901
    %vm1908 = vmor %vm1906, %vm1907
    %v1909 = vsel %vm1908, %v1901, %v1905
    %v1910 = vand.u32 2147483647, %v1900
    %vm1911 = vcmp.eq.f32.partialorder %v1910, 8.507059e+37
    %v1912 = vand.u32 %v1900, 2147483648
    %v1913 = vor.u32 1.1754944e-38, %v1912
    %v1914 = vsel %vm1911, %v1913, %v1909
    %v1915 = vmul.f32 1.0, %v1914
    %v1916 = vmul.f32 %v1895, %v1857
    %v1917 = vmul.f32 %v1876, %v1896
    %v1918 = vadd.f32 %v1916, %v1917
    %v1919 = vtanh.pop %v1918
    %v1920 = vmul.f32 %v1915, %v1919
    %v1921 = vld [vmem:[#allocation11] sm:$0xff]
    %v1922 = vld [vmem:[#allocation11 + $0x8] sm:$0xff]
    %v1923 = vld [vmem:[#allocation11 + $0x10] sm:$0xff]
    %v1924 = vld [vmem:[#allocation11 + $0x18] sm:$0xff]
    %v1925 = vld [vmem:[#allocation11 + $0x20] sm:$0xff]
    %v1926 = vld [vmem:[#allocation11 + $0x28] sm:$0xff]
    %v1927 = vld [vmem:[#allocation11 + $0x30] sm:$0xff]
    %v1928 = vld [vmem:[#allocation11 + $0x38] sm:$0xff]
    %v1929 = vld [vmem:[#allocation11 + $0x40] sm:$0xff]
    %v1930 = vld [vmem:[#allocation11 + $0x48] sm:$0xff]
    %v1931 = vld [vmem:[#allocation11 + $0x50] sm:$0xff]
    %v1932 = vld [vmem:[#allocation11 + $0x58] sm:$0xff]
    %v1933 = vld [vmem:[#allocation11 + $0x60] sm:$0xff]
    %v1934 = vld [vmem:[#allocation11 + $0x68] sm:$0xff]
    %v1935 = vld [vmem:[#allocation11 + $0x70] sm:$0xff]
    %v1936 = vld [vmem:[#allocation11 + $0x78] sm:$0xff]
    %v1937 = vld [vmem:[#allocation13] sm:$0xff]
    %v1938 = vld [vmem:[#allocation13 + $0x8] sm:$0xff]
    %v1939 = vld [vmem:[#allocation13 + $0x10] sm:$0xff]
    %v1940 = vld [vmem:[#allocation13 + $0x18] sm:$0xff]
    %v1941 = vld [vmem:[#allocation13 + $0x20] sm:$0xff]
    %v1942 = vld [vmem:[#allocation13 + $0x28] sm:$0xff]
    %v1943 = vld [vmem:[#allocation13 + $0x30] sm:$0xff]
    %v1944 = vld [vmem:[#allocation13 + $0x38] sm:$0xff]
    %v1945 = vld [vmem:[#allocation13 + $0x40] sm:$0xff]
    %v1946 = vld [vmem:[#allocation13 + $0x48] sm:$0xff]
    %v1947 = vld [vmem:[#allocation13 + $0x50] sm:$0xff]
    %v1948 = vld [vmem:[#allocation13 + $0x58] sm:$0xff]
    %v1949 = vld [vmem:[#allocation13 + $0x60] sm:$0xff]
    %v1950 = vld [vmem:[#allocation13 + $0x68] sm:$0xff]
    %v1951 = vld [vmem:[#allocation13 + $0x70] sm:$0xff]
    %v1952 = vld [vmem:[#allocation13 + $0x78] sm:$0xff]
    %1953 = vmatpush.msra.mxu0 %v1952
    %1954 = vmatpush.msra.mxu0 %v1951
    %1955 = vmatpush.msra.mxu0 %v1950
    %1956 = vmatpush.msra.mxu0 %v1949
    %1957 = vmatpush.msra.mxu0 %v1948
    %1958 = vmatpush.msra.mxu0 %v1947
    %1959 = vmatpush.msra.mxu0 %v1946
    %1960 = vmatpush.msra.mxu0 %v1945
    %1961 = vmatpush.msra.mxu0 %v1944
    %1962 = vmatpush.msra.mxu0 %v1943
    %1963 = vmatpush.msra.mxu0 %v1942
    %1964 = vmatpush.msra.mxu0 %v1941
    %1965 = vmatpush.msra.mxu0 %v1940
    %1966 = vmatpush.msra.mxu0 %v1939
    %1967 = vmatpush.msra.mxu0 %v1938
    %1968 = vmatpush.msra.mxu0 %v1937
    %1969 = vmatmul.f32.gmra.mxu0 %v1920
    %v1970 = vpop.f32.mrf.mxu0
    %v1971 = vadd.f32 0.0, %v1970
    %1972 = vdwg.mxu0
    %1973 = vmatpush.msra.mxu0 %v1936
    %1974 = vmatpush.msra.mxu0 %v1935
    %1975 = vmatpush.msra.mxu0 %v1934
    %1976 = vmatpush.msra.mxu0 %v1933
    %1977 = vmatpush.msra.mxu0 %v1932
    %1978 = vmatpush.msra.mxu0 %v1931
    %1979 = vmatpush.msra.mxu0 %v1930
    %1980 = vmatpush.msra.mxu0 %v1929
    %1981 = vmatpush.msra.mxu0 %v1928
    %1982 = vmatpush.msra.mxu0 %v1927
    %1983 = vmatpush.msra.mxu0 %v1926
    %1984 = vmatpush.msra.mxu0 %v1925
    %1985 = vmatpush.msra.mxu0 %v1924
    %1986 = vmatpush.msra.mxu0 %v1923
    %1987 = vmatpush.msra.mxu0 %v1922
    %1988 = vmatpush.msra.mxu0 %v1921
    %1989 = vmatmul.f32.gmra.mxu0 %v1609
    %v1990 = vpop.f32.mrf.mxu0
    %v1991 = vadd.f32 %v1971, %v1990
    %1992 = vdwg.mxu0
    %v1993 = vld [vmem:[%s13] sm:$0x1]
    %v1995 = vperm.slane %v1993, 0
    %v1997 = vadd.f32 %v1991, %v1995
    %1998 = vst [vmem:[#allocation14] sm:$0xff] %v1997
    // Predicated region
    $region86: #{tpu_custom_call.1} parent=1 // pred_check
      _
    $region87: #{tpu_custom_call.1} parent=1 // pred_check_branch
      %2000 = sbr.rel (0) target = $region89
    $region88: #{tpu_custom_call.1} parent=1 // pred_region
      %2002 = vsyncadd [#allocation4], 0
      %s2004 = sshll.u32 [#allocation14], 4
      %s2005 = int_to_ptr.vmem [resolvable:$true] %s2004
      %s2006 = sshll.u32 %s14, 4
      %s2007 = int_to_ptr.hbm [resolvable:$true] %s2006
      %2009 = dma.vmem_to_hbm [thread:$0]  %s2005, 128, %s2007, [#allocation4]
    $region89: #{tpu_custom_call.1} parent=1 // pred_fallthru
      _
    // Predicated region
    $region90: #{tpu_custom_call.1} parent=1 // pred_check
      _
    $region91: #{tpu_custom_call.1} parent=1 // pred_check_branch
      %2011 = sbr.rel (0) target = $region93
    $region92: #{tpu_custom_call.1} parent=1 // pred_region
      %2013 = dma.done [#allocation4], 128
    $region93: #{tpu_custom_call.1} parent=1 // pred_fallthru
      _
    %2014 = vsyncpa [#allocation3], 1
    %2015 = vsyncpa [#allocation6], 1
    %2016 = vsyncpa [#allocation9], 1
    %2017 = vsyncpa [#allocation12], 1
    %2018 = vsyncpa [#allocation4], 1

</llo_original>
